<compile_context>
chip_gen: v7x
topology: tpu7x:2x2x1
jax: 0.10.0
libtpu: 0.0.40
codegen_flags: <defaults>
</compile_context>

<pallas_src>
import functools
import numpy as np
import jax
import jax.numpy as jnp
from jax.experimental import pallas as pl
from jax.experimental.pallas import tpu as pltpu

LANE = 128   # TPU lane width (last dim)
SUB = 8      # TPU sublane width (second-to-last dim)


def _round_up(x, m):
    return (x + m - 1) // m * m


# ------------------------------ fused kernel --------------------------------

def _fused_kernel(x_ref, s1_ref, s2_ref, w_ref, b_ref, o_ref, *,
                  stage_layers, out_dim):
    """Whole SE2P_C3 forward in one kernel invocation.

    stage_layers = (#mlp_local, #mlp_global, #mlp_before_sum, #decoder_relu);
    a final no-ReLU decoder layer follows, then masked log_softmax over the
    first `out_dim` lanes.
    """
    n_local, n_global, n_before, n_dec_relu = stage_layers

    def dense(h_bf16, layer, relu):
        # bf16 MXU matmul with f32 accumulation; bias/ReLU stay f32 (VPU).
        acc = jnp.dot(h_bf16, w_ref[layer], preferred_element_type=jnp.float32)
        acc = acc + b_ref[layer]                      # (1, 128) broadcast
        if relu:
            # Cast once in the ReLU epilogue; activations stay bf16.
            return jnp.maximum(acc, 0.0).astype(jnp.bfloat16)
        return acc                                     # final layer stays f32

    li = 0
    h = x_ref[...]                                     # (R, 128) bf16
    for _ in range(n_local):                           # mlp_local
        h = dense(h, li, True); li += 1

    # scatter(reduce='sum') over perturbations: bf16 one-hot (0/1 exact in
    # bf16) x bf16 activations, f32 accumulate on the MXU.
    h = jnp.dot(s1_ref[...], h,
                preferred_element_type=jnp.float32).astype(jnp.bfloat16)

    for _ in range(n_global):                          # mlp_global
        h = dense(h, li, True); li += 1
    for _ in range(n_before):                          # mlp_before_sum
        h = dense(h, li, True); li += 1

    # global_add_pool: bf16 one-hot x bf16, f32 accumulate.
    h = jnp.dot(s2_ref[...], h,
                preferred_element_type=jnp.float32).astype(jnp.bfloat16)

    for _ in range(n_dec_relu):                        # decoder (ReLU layers)
        h = dense(h, li, True); li += 1
    y = dense(h, li, False)                            # final decoder Linear

    # log_softmax over the first out_dim (valid) lanes only.
    col = jax.lax.broadcasted_iota(jnp.int32, y.shape, 1)
    valid = col < out_dim
    ym = jnp.where(valid, y, jnp.float32(-1e30))
    m = jnp.max(ym, axis=-1, keepdims=True)
    s = ym - m
    e = jnp.where(valid, jnp.exp(s), 0.0)
    lse = jnp.log(jnp.sum(e, axis=-1, keepdims=True))
    o_ref[...] = s - lse


# --------------------- host-side glue (plain NumPy / JAX) -------------------

def build_segment_matrices(ptr, num_perturbations):
    """Reproduces idx_cat / batch_indexing of SE2P_C3.forward as one-hot mats."""
    ptr = np.asarray(ptr, dtype=np.int64)
    nodes = (np.diff(ptr) // num_perturbations).astype(np.int64)
    idx_list, start = [], 0
    for n in nodes:
        idx_list.append(np.tile(np.arange(start, start + n), num_perturbations))
        start += n
    idx_cat = np.concatenate(idx_list, axis=0)
    n_rows = idx_cat.shape[0]
    n_orig = int(nodes.sum())

    s1 = np.zeros((n_orig, n_rows), np.float32)        # scatter(sum) matrix
    s1[idx_cat, np.arange(n_rows)] = 1.0

    batch_indexing = np.zeros(n_orig, np.int64)
    start = 0
    for g, n in enumerate(nodes):
        batch_indexing[start:start + n] = g
        start += n
    n_graphs = len(nodes)
    s2 = np.zeros((n_graphs, n_orig), np.float32)      # global_add_pool matrix
    s2[batch_indexing, np.arange(n_orig)] = 1.0
    return s1, s2


def _pad2(a, rows, cols):
    r, c = a.shape
    return jnp.pad(a, ((0, rows - r), (0, cols - c)))


def pack_layers(all_layers):
    """Zero-pad every (w, b) to (128,128)/(1,128) and stack."""
    ws, bs = [], []
    for w, b in all_layers:
        ws.append(_pad2(w, LANE, LANE))
        bs.append(_pad2(b.reshape(1, -1), 1, LANE))
    W = jnp.stack(ws).astype(jnp.bfloat16)             # (L, 128, 128) bf16
    B = jnp.stack(bs).astype(jnp.float32)              # (L, 1, 128)  f32
    return W, B


def prepare_se2p_c3(ptr, num_perturbations, params, output_size):
    """Build all structure/parameter constants ONCE (device-resident) and
    return a jitted forward(x) — no per-call host construction/uploads."""
    s1_np, s2_np = build_segment_matrices(ptr, num_perturbations)
    n_orig, n_total = s1_np.shape
    n_graphs = s2_np.shape[0]

    # Lane-dense padding: last dims of s1/s2 to multiples of 128; x rows match.
    R = _round_up(n_total, LANE)
    Mo = _round_up(n_orig, LANE)
    G = _round_up(n_graphs, SUB)

    # One-hot matrices: 0/1 are exact in bf16; zero pad rows/cols are inert.
    s1 = jnp.asarray(np.pad(s1_np, ((0, Mo - n_orig), (0, R - n_total))),
                     jnp.bfloat16)
    s2 = jnp.asarray(np.pad(s2_np, ((0, G - n_graphs), (0, Mo - n_orig))),
                     jnp.bfloat16)

    all_layers = (params["mlp_local"] + params["mlp_global"]
                  + params["mlp_before_sum"] + params["decoder"])
    stage_layers = (len(params["mlp_local"]), len(params["mlp_global"]),
                    len(params["mlp_before_sum"]), len(params["decoder"]) - 1)
    W, B = pack_layers(all_layers)
    L = W.shape[0]

    # Advisory cost estimate so XLA can overlap surrounding ops.
    flops = (2 * R * LANE * LANE * stage_layers[0]
             + 2 * Mo * R * LANE
             + 2 * Mo * LANE * LANE * (stage_layers[1] + stage_layers[2])
             + 2 * G * Mo * LANE
             + 2 * G * LANE * LANE * (stage_layers[3] + 1))
    bytes_accessed = (R * LANE * 2 + Mo * R * 2 + G * Mo * 2
                      + L * LANE * LANE * 2 + L * LANE * 4 + G * LANE * 4)
    cost = pl.CostEstimate(flops=int(flops), transcendentals=int(G * LANE),
                           bytes_accessed=int(bytes_accessed))

    kernel = pl.pallas_call(
        functools.partial(_fused_kernel, stage_layers=stage_layers,
                          out_dim=output_size),
        grid=(1,),
        in_specs=[pl.BlockSpec((R, LANE), lambda i: (0, 0)),
                  pl.BlockSpec((Mo, R), lambda i: (0, 0)),
                  pl.BlockSpec((G, Mo), lambda i: (0, 0)),
                  pl.BlockSpec((L, LANE, LANE), lambda i: (0, 0, 0)),
                  pl.BlockSpec((L, 1, LANE), lambda i: (0, 0, 0))],
        out_specs=pl.BlockSpec((G, LANE), lambda i: (0, 0)),
        out_shape=jax.ShapeDtypeStruct((G, LANE), jnp.float32),
        compiler_params=pltpu.CompilerParams(
            dimension_semantics=("arbitrary",),
            vmem_limit_bytes=32 * 1024 * 1024),   # explicit, safe on v5e/v6e/v7x
        cost_estimate=cost,
    )

    @jax.jit
    def forward(x):
        n, fin = x.shape
        x_pad = jnp.pad(x, ((0, R - n), (0, LANE - fin))).astype(jnp.bfloat16)
        out_pad = kernel(x_pad, s1, s2, W, B)
        return out_pad[:n_graphs, :output_size]

    return forward


def se2p_c3_reference(x, ptr, num_perturbations, params, output_size):
    """Plain-JAX reference mirroring the kernel's bf16-activation recipe."""
    s1_np, s2_np = build_segment_matrices(ptr, num_perturbations)
    s1 = jnp.asarray(s1_np, jnp.bfloat16)
    s2 = jnp.asarray(s2_np, jnp.bfloat16)

    def dense(h, w, b, relu):
        acc = jnp.dot(h.astype(jnp.bfloat16), w.astype(jnp.bfloat16),
                      preferred_element_type=jnp.float32) + b
        if relu:
            return jnp.maximum(acc, 0.0).astype(jnp.bfloat16)
        return acc

    h = x.astype(jnp.bfloat16)
    for w, b in params["mlp_local"]:
        h = dense(h, w, b, True)
    h = jnp.dot(s1, h, preferred_element_type=jnp.float32).astype(jnp.bfloat16)
    for w, b in params["mlp_global"]:
        h = dense(h, w, b, True)
    for w, b in params["mlp_before_sum"]:
        h = dense(h, w, b, True)
    h = jnp.dot(s2, h, preferred_element_type=jnp.float32).astype(jnp.bfloat16)
    for w, b in params["decoder"][:-1]:
        h = dense(h, w, b, True)
    w, b = params["decoder"][-1]
    y = dense(h, w, b, False)
    return jax.nn.log_softmax(y, axis=-1)[:, :output_size]


# ------------------------------ parameters ----------------------------------

def init_linear(key, fan_in, fan_out):
    kw, kb = jax.random.split(key)
    bound = 1.0 / np.sqrt(fan_in)
    w = jax.random.uniform(kw, (fan_in, fan_out), jnp.float32, -bound, bound)
    b = jax.random.uniform(kb, (fan_out,), jnp.float32, -bound, bound)
    return w, b


def make_mlp_params(key, input_size, hidden_size, num_layers):
    params = []
    in_sz = input_size
    for _ in range(num_layers + 1):
        key, sub = jax.random.split(key)
        params.append(init_linear(sub, in_sz, hidden_size))
        in_sz = hidden_size
    return params, key


# --------------------------------- main --------------------------------------

if __name__ == "__main__":
    # Synthetic config (args)
    input_size = 16
    hidden_dim = 32
    output_size = 8
    ds_mi, ds_mo, n_p, n_f = 1, 1, 1, 2
    hidden_factor = 2
    num_perturbations = 3
    num_graphs = 2
    nodes_per_graph = 8

    key = jax.random.PRNGKey(0)

    params = {}
    params["mlp_local"], key = make_mlp_params(key, input_size, hidden_dim, ds_mi)
    params["mlp_global"], key = make_mlp_params(key, hidden_dim, hidden_dim, ds_mo)
    params["mlp_before_sum"], key = make_mlp_params(key, hidden_dim, hidden_dim, n_p)

    # Decoder: hidden_sizes = [H, H//2, H//4, ...] (n_f steps) + final Linear.
    hidden_sizes = [hidden_dim] + [hidden_dim // hidden_factor ** (i + 1)
                                   for i in range(n_f)]
    dec = []
    for i in range(n_f):
        key, sub = jax.random.split(key)
        dec.append(init_linear(sub, hidden_sizes[i], hidden_sizes[i + 1]))
    key, sub = jax.random.split(key)
    dec.append(init_linear(sub, hidden_sizes[-1], output_size))
    params["decoder"] = dec

    # Synthetic batched graph data (PyG-style): each graph's rows are
    # num_perturbations stacked copies of its nodes_per_graph nodes.
    rows_per_graph = num_perturbations * nodes_per_graph
    n_total = num_graphs * rows_per_graph
    key, kx = jax.random.split(key)
    x = jax.random.normal(kx, (n_total, input_size), jnp.float32)
    ptr = np.arange(num_graphs + 1) * rows_per_graph      # [0, 24, 48]

    # One-time structure/parameter prep (hoisted out of the per-call path).
    forward = prepare_se2p_c3(ptr, num_perturbations, params, output_size)

    out = forward(x)
    out = jax.block_until_ready(out)

    ref = se2p_c3_reference(x, ptr, num_perturbations, params, output_size)

    assert out.shape == (num_graphs, output_size)
    assert bool(jnp.all(jnp.isfinite(out)))
    # log_softmax rows must sum to ~1 in prob space
    assert bool(jnp.allclose(jnp.sum(jnp.exp(out), axis=-1), 1.0, atol=1e-5))
    # must match the plain-JAX reference
    assert bool(jnp.allclose(out, ref, atol=1e-2, rtol=1e-2))
    print("KERNEL_OK")
</pallas_src>

<mosaic_0001>
module attributes {stable_mosaic.version = 11 : i64} {
  func.func @_fused_kernel(%arg0: i32, %arg1: memref<128x128xbf16, #tpu.memory_space<vmem>>, %arg2: memref<128x128xbf16, #tpu.memory_space<vmem>>, %arg3: memref<8x128xbf16, #tpu.memory_space<vmem>>, %arg4: memref<9x128x128xbf16, #tpu.memory_space<vmem>>, %arg5: memref<9x1x128xf32, #tpu.memory_space<vmem>>, %arg6: memref<8x128xf32, #tpu.memory_space<vmem>>) attributes {dimension_semantics = [#tpu.dimension_semantics<arbitrary>], iteration_bounds = array<i64: 1>, scalar_prefetch = 0 : i64, scratch_operands = 0 : i64, tpu.core_type = #tpu.core_type<tc>, window_params = [{pipeline_mode = #tpu.pipeline_mode<synchronous>, transform_indices = @transform_0, window_bounds = array<i64: 128, 128>}, {pipeline_mode = #tpu.pipeline_mode<synchronous>, transform_indices = @transform_1, window_bounds = array<i64: 128, 128>}, {pipeline_mode = #tpu.pipeline_mode<synchronous>, transform_indices = @transform_2, window_bounds = array<i64: 8, 128>}, {pipeline_mode = #tpu.pipeline_mode<synchronous>, transform_indices = @transform_3, window_bounds = array<i64: 9, 128, 128>}, {pipeline_mode = #tpu.pipeline_mode<synchronous>, transform_indices = @transform_4, window_bounds = array<i64: 9, 1, 128>}, {pipeline_mode = #tpu.pipeline_mode<synchronous>, transform_indices = @transform_5, window_bounds = array<i64: 8, 128>}]} {
    %c0 = arith.constant 0 : index
    %c0_0 = arith.constant 0 : index
    %0 = vector.load %arg1[%c0, %c0_0] : memref<128x128xbf16, #tpu.memory_space<vmem>>, vector<128x128xbf16>
    %c0_1 = arith.constant 0 : index
    %c0_2 = arith.constant 0 : index
    %c0_3 = arith.constant 0 : index
    %1 = vector.load %arg4[%c0_1, %c0_2, %c0_3] : memref<9x128x128xbf16, #tpu.memory_space<vmem>>, vector<1x128x128xbf16>
    %2 = vector.shape_cast %1 : vector<1x128x128xbf16> to vector<128x128xbf16>
    %cst = arith.constant dense<0.000000e+00> : vector<128x128xf32>
    %3 = tpu.matmul %0, %2, %cst {dimension_numbers = #tpu.dot_dimension_numbers<[1], [0], [0], [1], [0, 0, 1, 1], [], []>} : vector<128x128xbf16>, vector<128x128xbf16>, vector<128x128xf32> -> vector<128x128xf32>
    %c0_4 = arith.constant 0 : index
    %c0_5 = arith.constant 0 : index
    %c0_6 = arith.constant 0 : index
    %4 = vector.load %arg5[%c0_4, %c0_5, %c0_6] : memref<9x1x128xf32, #tpu.memory_space<vmem>>, vector<1x1x128xf32>
    %5 = vector.shape_cast %4 : vector<1x1x128xf32> to vector<1x128xf32>
    %6 = vector.broadcast %5 : vector<1x128xf32> to vector<128x128xf32>
    %7 = arith.addf %3, %6 : vector<128x128xf32>
    %cst_7 = arith.constant 0.000000e+00 : f32
    %8 = vector.broadcast %cst_7 : f32 to vector<128x128xf32>
    %9 = arith.maximumf %7, %8 : vector<128x128xf32>
    %10 = arith.truncf %9 : vector<128x128xf32> to vector<128x128xbf16>
    %c1 = arith.constant 1 : index
    %c0_8 = arith.constant 0 : index
    %c0_9 = arith.constant 0 : index
    %11 = vector.load %arg4[%c1, %c0_8, %c0_9] : memref<9x128x128xbf16, #tpu.memory_space<vmem>>, vector<1x128x128xbf16>
    %12 = vector.shape_cast %11 : vector<1x128x128xbf16> to vector<128x128xbf16>
    %cst_10 = arith.constant dense<0.000000e+00> : vector<128x128xf32>
    %13 = tpu.matmul %10, %12, %cst_10 {dimension_numbers = #tpu.dot_dimension_numbers<[1], [0], [0], [1], [0, 0, 1, 1], [], []>} : vector<128x128xbf16>, vector<128x128xbf16>, vector<128x128xf32> -> vector<128x128xf32>
    %c1_11 = arith.constant 1 : index
    %c0_12 = arith.constant 0 : index
    %c0_13 = arith.constant 0 : index
    %14 = vector.load %arg5[%c1_11, %c0_12, %c0_13] : memref<9x1x128xf32, #tpu.memory_space<vmem>>, vector<1x1x128xf32>
    %15 = vector.shape_cast %14 : vector<1x1x128xf32> to vector<1x128xf32>
    %16 = vector.broadcast %15 : vector<1x128xf32> to vector<128x128xf32>
    %17 = arith.addf %13, %16 : vector<128x128xf32>
    %cst_14 = arith.constant 0.000000e+00 : f32
    %18 = vector.broadcast %cst_14 : f32 to vector<128x128xf32>
    %19 = arith.maximumf %17, %18 : vector<128x128xf32>
    %20 = arith.truncf %19 : vector<128x128xf32> to vector<128x128xbf16>
    %c0_15 = arith.constant 0 : index
    %c0_16 = arith.constant 0 : index
    %21 = vector.load %arg2[%c0_15, %c0_16] : memref<128x128xbf16, #tpu.memory_space<vmem>>, vector<128x128xbf16>
    %cst_17 = arith.constant dense<0.000000e+00> : vector<128x128xf32>
    %22 = tpu.matmul %21, %20, %cst_17 {dimension_numbers = #tpu.dot_dimension_numbers<[1], [0], [0], [1], [0, 0, 1, 1], [], []>} : vector<128x128xbf16>, vector<128x128xbf16>, vector<128x128xf32> -> vector<128x128xf32>
    %23 = arith.truncf %22 : vector<128x128xf32> to vector<128x128xbf16>
    %c2 = arith.constant 2 : index
    %c0_18 = arith.constant 0 : index
    %c0_19 = arith.constant 0 : index
    %24 = vector.load %arg4[%c2, %c0_18, %c0_19] : memref<9x128x128xbf16, #tpu.memory_space<vmem>>, vector<1x128x128xbf16>
    %25 = vector.shape_cast %24 : vector<1x128x128xbf16> to vector<128x128xbf16>
    %cst_20 = arith.constant dense<0.000000e+00> : vector<128x128xf32>
    %26 = tpu.matmul %23, %25, %cst_20 {dimension_numbers = #tpu.dot_dimension_numbers<[1], [0], [0], [1], [0, 0, 1, 1], [], []>} : vector<128x128xbf16>, vector<128x128xbf16>, vector<128x128xf32> -> vector<128x128xf32>
    %c2_21 = arith.constant 2 : index
    %c0_22 = arith.constant 0 : index
    %c0_23 = arith.constant 0 : index
    %27 = vector.load %arg5[%c2_21, %c0_22, %c0_23] : memref<9x1x128xf32, #tpu.memory_space<vmem>>, vector<1x1x128xf32>
    %28 = vector.shape_cast %27 : vector<1x1x128xf32> to vector<1x128xf32>
    %29 = vector.broadcast %28 : vector<1x128xf32> to vector<128x128xf32>
    %30 = arith.addf %26, %29 : vector<128x128xf32>
    %cst_24 = arith.constant 0.000000e+00 : f32
    %31 = vector.broadcast %cst_24 : f32 to vector<128x128xf32>
    %32 = arith.maximumf %30, %31 : vector<128x128xf32>
    %33 = arith.truncf %32 : vector<128x128xf32> to vector<128x128xbf16>
    %c3 = arith.constant 3 : index
    %c0_25 = arith.constant 0 : index
    %c0_26 = arith.constant 0 : index
    %34 = vector.load %arg4[%c3, %c0_25, %c0_26] : memref<9x128x128xbf16, #tpu.memory_space<vmem>>, vector<1x128x128xbf16>
    %35 = vector.shape_cast %34 : vector<1x128x128xbf16> to vector<128x128xbf16>
    %cst_27 = arith.constant dense<0.000000e+00> : vector<128x128xf32>
    %36 = tpu.matmul %33, %35, %cst_27 {dimension_numbers = #tpu.dot_dimension_numbers<[1], [0], [0], [1], [0, 0, 1, 1], [], []>} : vector<128x128xbf16>, vector<128x128xbf16>, vector<128x128xf32> -> vector<128x128xf32>
    %c3_28 = arith.constant 3 : index
    %c0_29 = arith.constant 0 : index
    %c0_30 = arith.constant 0 : index
    %37 = vector.load %arg5[%c3_28, %c0_29, %c0_30] : memref<9x1x128xf32, #tpu.memory_space<vmem>>, vector<1x1x128xf32>
    %38 = vector.shape_cast %37 : vector<1x1x128xf32> to vector<1x128xf32>
    %39 = vector.broadcast %38 : vector<1x128xf32> to vector<128x128xf32>
    %40 = arith.addf %36, %39 : vector<128x128xf32>
    %cst_31 = arith.constant 0.000000e+00 : f32
    %41 = vector.broadcast %cst_31 : f32 to vector<128x128xf32>
    %42 = arith.maximumf %40, %41 : vector<128x128xf32>
    %43 = arith.truncf %42 : vector<128x128xf32> to vector<128x128xbf16>
    %c4 = arith.constant 4 : index
    %c0_32 = arith.constant 0 : index
    %c0_33 = arith.constant 0 : index
    %44 = vector.load %arg4[%c4, %c0_32, %c0_33] : memref<9x128x128xbf16, #tpu.memory_space<vmem>>, vector<1x128x128xbf16>
    %45 = vector.shape_cast %44 : vector<1x128x128xbf16> to vector<128x128xbf16>
    %cst_34 = arith.constant dense<0.000000e+00> : vector<128x128xf32>
    %46 = tpu.matmul %43, %45, %cst_34 {dimension_numbers = #tpu.dot_dimension_numbers<[1], [0], [0], [1], [0, 0, 1, 1], [], []>} : vector<128x128xbf16>, vector<128x128xbf16>, vector<128x128xf32> -> vector<128x128xf32>
    %c4_35 = arith.constant 4 : index
    %c0_36 = arith.constant 0 : index
    %c0_37 = arith.constant 0 : index
    %47 = vector.load %arg5[%c4_35, %c0_36, %c0_37] : memref<9x1x128xf32, #tpu.memory_space<vmem>>, vector<1x1x128xf32>
    %48 = vector.shape_cast %47 : vector<1x1x128xf32> to vector<1x128xf32>
    %49 = vector.broadcast %48 : vector<1x128xf32> to vector<128x128xf32>
    %50 = arith.addf %46, %49 : vector<128x128xf32>
    %cst_38 = arith.constant 0.000000e+00 : f32
    %51 = vector.broadcast %cst_38 : f32 to vector<128x128xf32>
    %52 = arith.maximumf %50, %51 : vector<128x128xf32>
    %53 = arith.truncf %52 : vector<128x128xf32> to vector<128x128xbf16>
    %c5 = arith.constant 5 : index
    %c0_39 = arith.constant 0 : index
    %c0_40 = arith.constant 0 : index
    %54 = vector.load %arg4[%c5, %c0_39, %c0_40] : memref<9x128x128xbf16, #tpu.memory_space<vmem>>, vector<1x128x128xbf16>
    %55 = vector.shape_cast %54 : vector<1x128x128xbf16> to vector<128x128xbf16>
    %cst_41 = arith.constant dense<0.000000e+00> : vector<128x128xf32>
    %56 = tpu.matmul %53, %55, %cst_41 {dimension_numbers = #tpu.dot_dimension_numbers<[1], [0], [0], [1], [0, 0, 1, 1], [], []>} : vector<128x128xbf16>, vector<128x128xbf16>, vector<128x128xf32> -> vector<128x128xf32>
    %c5_42 = arith.constant 5 : index
    %c0_43 = arith.constant 0 : index
    %c0_44 = arith.constant 0 : index
    %57 = vector.load %arg5[%c5_42, %c0_43, %c0_44] : memref<9x1x128xf32, #tpu.memory_space<vmem>>, vector<1x1x128xf32>
    %58 = vector.shape_cast %57 : vector<1x1x128xf32> to vector<1x128xf32>
    %59 = vector.broadcast %58 : vector<1x128xf32> to vector<128x128xf32>
    %60 = arith.addf %56, %59 : vector<128x128xf32>
    %cst_45 = arith.constant 0.000000e+00 : f32
    %61 = vector.broadcast %cst_45 : f32 to vector<128x128xf32>
    %62 = arith.maximumf %60, %61 : vector<128x128xf32>
    %63 = arith.truncf %62 : vector<128x128xf32> to vector<128x128xbf16>
    %c0_46 = arith.constant 0 : index
    %c0_47 = arith.constant 0 : index
    %64 = vector.load %arg3[%c0_46, %c0_47] : memref<8x128xbf16, #tpu.memory_space<vmem>>, vector<8x128xbf16>
    %cst_48 = arith.constant dense<0.000000e+00> : vector<8x128xf32>
    %65 = tpu.matmul %64, %63, %cst_48 {dimension_numbers = #tpu.dot_dimension_numbers<[1], [0], [0], [1], [0, 0, 1, 1], [], []>} : vector<8x128xbf16>, vector<128x128xbf16>, vector<8x128xf32> -> vector<8x128xf32>
    %66 = arith.truncf %65 : vector<8x128xf32> to vector<8x128xbf16>
    %c6 = arith.constant 6 : index
    %c0_49 = arith.constant 0 : index
    %c0_50 = arith.constant 0 : index
    %67 = vector.load %arg4[%c6, %c0_49, %c0_50] : memref<9x128x128xbf16, #tpu.memory_space<vmem>>, vector<1x128x128xbf16>
    %68 = vector.shape_cast %67 : vector<1x128x128xbf16> to vector<128x128xbf16>
    %cst_51 = arith.constant dense<0.000000e+00> : vector<8x128xf32>
    %69 = tpu.matmul %66, %68, %cst_51 {dimension_numbers = #tpu.dot_dimension_numbers<[1], [0], [0], [1], [0, 0, 1, 1], [], []>} : vector<8x128xbf16>, vector<128x128xbf16>, vector<8x128xf32> -> vector<8x128xf32>
    %c6_52 = arith.constant 6 : index
    %c0_53 = arith.constant 0 : index
    %c0_54 = arith.constant 0 : index
    %70 = vector.load %arg5[%c6_52, %c0_53, %c0_54] : memref<9x1x128xf32, #tpu.memory_space<vmem>>, vector<1x1x128xf32>
    %71 = vector.shape_cast %70 : vector<1x1x128xf32> to vector<1x128xf32>
    %72 = vector.broadcast %71 : vector<1x128xf32> to vector<8x128xf32>
    %73 = arith.addf %69, %72 : vector<8x128xf32>
    %cst_55 = arith.constant 0.000000e+00 : f32
    %74 = vector.broadcast %cst_55 : f32 to vector<8x128xf32>
    %75 = arith.maximumf %73, %74 : vector<8x128xf32>
    %76 = arith.truncf %75 : vector<8x128xf32> to vector<8x128xbf16>
    %c7 = arith.constant 7 : index
    %c0_56 = arith.constant 0 : index
    %c0_57 = arith.constant 0 : index
    %77 = vector.load %arg4[%c7, %c0_56, %c0_57] : memref<9x128x128xbf16, #tpu.memory_space<vmem>>, vector<1x128x128xbf16>
    %78 = vector.shape_cast %77 : vector<1x128x128xbf16> to vector<128x128xbf16>
    %cst_58 = arith.constant dense<0.000000e+00> : vector<8x128xf32>
    %79 = tpu.matmul %76, %78, %cst_58 {dimension_numbers = #tpu.dot_dimension_numbers<[1], [0], [0], [1], [0, 0, 1, 1], [], []>} : vector<8x128xbf16>, vector<128x128xbf16>, vector<8x128xf32> -> vector<8x128xf32>
    %c7_59 = arith.constant 7 : index
    %c0_60 = arith.constant 0 : index
    %c0_61 = arith.constant 0 : index
    %80 = vector.load %arg5[%c7_59, %c0_60, %c0_61] : memref<9x1x128xf32, #tpu.memory_space<vmem>>, vector<1x1x128xf32>
    %81 = vector.shape_cast %80 : vector<1x1x128xf32> to vector<1x128xf32>
    %82 = vector.broadcast %81 : vector<1x128xf32> to vector<8x128xf32>
    %83 = arith.addf %79, %82 : vector<8x128xf32>
    %cst_62 = arith.constant 0.000000e+00 : f32
    %84 = vector.broadcast %cst_62 : f32 to vector<8x128xf32>
    %85 = arith.maximumf %83, %84 : vector<8x128xf32>
    %86 = arith.truncf %85 : vector<8x128xf32> to vector<8x128xbf16>
    %c8 = arith.constant 8 : index
    %c0_63 = arith.constant 0 : index
    %c0_64 = arith.constant 0 : index
    %87 = vector.load %arg4[%c8, %c0_63, %c0_64] : memref<9x128x128xbf16, #tpu.memory_space<vmem>>, vector<1x128x128xbf16>
    %88 = vector.shape_cast %87 : vector<1x128x128xbf16> to vector<128x128xbf16>
    %cst_65 = arith.constant dense<0.000000e+00> : vector<8x128xf32>
    %89 = tpu.matmul %86, %88, %cst_65 {dimension_numbers = #tpu.dot_dimension_numbers<[1], [0], [0], [1], [0, 0, 1, 1], [], []>} : vector<8x128xbf16>, vector<128x128xbf16>, vector<8x128xf32> -> vector<8x128xf32>
    %c8_66 = arith.constant 8 : index
    %c0_67 = arith.constant 0 : index
    %c0_68 = arith.constant 0 : index
    %90 = vector.load %arg5[%c8_66, %c0_67, %c0_68] : memref<9x1x128xf32, #tpu.memory_space<vmem>>, vector<1x1x128xf32>
    %91 = vector.shape_cast %90 : vector<1x1x128xf32> to vector<1x128xf32>
    %92 = vector.broadcast %91 : vector<1x128xf32> to vector<8x128xf32>
    %93 = arith.addf %89, %92 : vector<8x128xf32>
    %94 = tpu.iota {dimensions = array<i32: 1>} : vector<8x128xi32>
    %c8_i32 = arith.constant 8 : i32
    %95 = vector.broadcast %c8_i32 : i32 to vector<8x128xi32>
    %96 = arith.cmpi slt, %94, %95 : vector<8x128xi32>
    %cst_69 = arith.constant -1.000000e+30 : f32
    %97 = vector.broadcast %cst_69 : f32 to vector<8x128xf32>
    %98 = arith.select %96, %93, %97 : vector<8x128xi1>, vector<8x128xf32>
    %cst_70 = arith.constant dense<0xFF800000> : vector<8xf32>
    %99 = vector.multi_reduction <maximumf>, %98, %cst_70 [1] : vector<8x128xf32> to vector<8xf32>
    %100 = vector.shape_cast %99 : vector<8xf32> to vector<8x1xf32>
    %101 = vector.broadcast %100 : vector<8x1xf32> to vector<8x128xf32>
    %102 = arith.subf %98, %101 : vector<8x128xf32>
    %103 = math.exp %102 : vector<8x128xf32>
    %cst_71 = arith.constant 0.000000e+00 : f32
    %104 = vector.broadcast %cst_71 : f32 to vector<8x128xf32>
    %105 = arith.select %96, %103, %104 : vector<8x128xi1>, vector<8x128xf32>
    %cst_72 = arith.constant dense<0.000000e+00> : vector<8xf32>
    %106 = vector.multi_reduction <add>, %105, %cst_72 [1] : vector<8x128xf32> to vector<8xf32>
    %107 = vector.shape_cast %106 : vector<8xf32> to vector<8x1xf32>
    %108 = math.log %107 : vector<8x1xf32>
    %109 = vector.broadcast %108 : vector<8x1xf32> to vector<8x128xf32>
    %110 = arith.subf %102, %109 : vector<8x128xf32>
    %c0_73 = arith.constant 0 : index
    %c0_74 = arith.constant 0 : index
    %111 = vector.load %arg6[%c0_73, %c0_74] : memref<8x128xf32, #tpu.memory_space<vmem>>, vector<8x128xf32>
    tpu.vector_store %arg6[%c0_73, %c0_74], %110 {strides = array<i32>} : memref<8x128xf32, #tpu.memory_space<vmem>>, vector<8x128xf32>,
    return
  }
  func.func @transform_0(%arg0: i32) -> (i32, i32) {
    %c0_i32 = arith.constant 0 : i32
    %c0_i32_0 = arith.constant 0 : i32
    %c0_i32_1 = arith.constant 0 : i32
    return %c0_i32, %c0_i32_0 : i32, i32
  }
  func.func @transform_1(%arg0: i32) -> (i32, i32) {
    %c0_i32 = arith.constant 0 : i32
    %c0_i32_0 = arith.constant 0 : i32
    %c0_i32_1 = arith.constant 0 : i32
    return %c0_i32, %c0_i32_0 : i32, i32
  }
  func.func @transform_2(%arg0: i32) -> (i32, i32) {
    %c0_i32 = arith.constant 0 : i32
    %c0_i32_0 = arith.constant 0 : i32
    %c0_i32_1 = arith.constant 0 : i32
    return %c0_i32, %c0_i32_0 : i32, i32
  }
  func.func @transform_3(%arg0: i32) -> (i32, i32, i32) {
    %c0_i32 = arith.constant 0 : i32
    %c0_i32_0 = arith.constant 0 : i32
    %c0_i32_1 = arith.constant 0 : i32
    %c0_i32_2 = arith.constant 0 : i32
    return %c0_i32, %c0_i32_0, %c0_i32_1 : i32, i32, i32
  }
  func.func @transform_4(%arg0: i32) -> (i32, i32, i32) {
    %c0_i32 = arith.constant 0 : i32
    %c0_i32_0 = arith.constant 0 : i32
    %c0_i32_1 = arith.constant 0 : i32
    %c0_i32_2 = arith.constant 0 : i32
    return %c0_i32, %c0_i32_0, %c0_i32_1 : i32, i32, i32
  }
  func.func @transform_5(%arg0: i32) -> (i32, i32) {
    %c0_i32 = arith.constant 0 : i32
    %c0_i32_0 = arith.constant 0 : i32
    %c0_i32_1 = arith.constant 0 : i32
    return %c0_i32, %c0_i32_0 : i32, i32
  }
}

</mosaic_0001>

<llo_original>
// kernel: forward.1
$region0: #{forward.1}
  #allocation0 [shape = 'u32[]', space=smem, size = 0x4, offset = 0x4, fixed_abs, tag = 'smem constant byte address 0x4 - core index']
  #allocation1 [shape = 'u32[144,128]{1,0:T(1,128)}', space=vmem, size = 0x12000, scoped, tag = 'internal scratch']
  %s0 = inlined_call_operand.vmem [shape: bf16[128,128], index: 0, kind: input, shape index: {}]
  %s1 = inlined_call_operand.vmem [shape: bf16[128,128], index: 1, kind: input, shape index: {}]
  %s2 = inlined_call_operand.vmem [shape: bf16[8,128], index: 2, kind: input, shape index: {}]
  %s3 = inlined_call_operand.hbm [shape: bf16[9,128,128], index: 3, kind: input, shape index: {}]
  %s4 = inlined_call_operand.vmem [shape: f32[9,1,128], index: 4, kind: input, shape index: {}]
  %s5 = inlined_call_operand.vmem [shape: f32[8,128], index: 5, kind: output, shape index: {}]
  %s6 = sld [smem:[#allocation0]]
  $region34: #{forward.1} parent=0
    _
  %s8 = ssub.s32 1, %s6
  %s9 = scalar_select 0, %s8, %s6
  $region1: #{forward.1} parent=0
    #allocation2 [shape = 'u8[294912]{0}', space=vmem, size = 0x48000, scoped, tag = 'input window, operand 3, single buffered']
    #allocation3 [shape = 's32[1]{0}', space=sflag, size = 0x4, scoped, tag = 'scoped memory for forward.1']
    %10 = vsyncpa [#allocation3], 0
    // Predicated region
    $region2: #{forward.1} parent=1 // pred_check
      _
    $region3: #{forward.1} parent=1 // pred_check_branch
      %12 = sbr.rel (0) target = $region5
    $region4: #{forward.1} parent=1 // pred_region
      _
    $region5: #{forward.1} parent=1 // pred_fallthru
      _
    // Predicated region
    $region6: #{forward.1} parent=1 // pred_check
      _
    $region7: #{forward.1} parent=1 // pred_check_branch
      %14 = sbr.rel (0) target = $region9
    $region8: #{forward.1} parent=1 // pred_region
      _
    $region9: #{forward.1} parent=1 // pred_fallthru
      _
    // Predicated region
    $region10: #{forward.1} parent=1 // pred_check
      _
    $region11: #{forward.1} parent=1 // pred_check_branch
      %16 = sbr.rel (0) target = $region13
    $region12: #{forward.1} parent=1 // pred_region
      _
    $region13: #{forward.1} parent=1 // pred_fallthru
      _
    // Predicated region
    $region14: #{forward.1} parent=1 // pred_check
      _
    $region15: #{forward.1} parent=1 // pred_check_branch
      %18 = sbr.rel (0) target = $region17
    $region16: #{forward.1} parent=1 // pred_region
      %s20 = ssub.s32 9216, 9216
      %21 = vsyncadd [#allocation3], %s20
      %s22 = sshll.u32 [#allocation2], 4
      %s23 = int_to_ptr.vmem [resolvable:$true] %s22
      %28 = dma.hbm_to_vmem [thread:$0]  %s3, 9216, %s23, [#allocation3], 64, 64, 4
    $region17: #{forward.1} parent=1 // pred_fallthru
      _
    // Predicated region
    $region18: #{forward.1} parent=1 // pred_check
      _
    $region19: #{forward.1} parent=1 // pred_check_branch
      %30 = sbr.rel (0) target = $region21
    $region20: #{forward.1} parent=1 // pred_region
      _
    $region21: #{forward.1} parent=1 // pred_fallthru
      _
    // Predicated region
    $region22: #{forward.1} parent=1 // pred_check
      _
    $region23: #{forward.1} parent=1 // pred_check_branch
      %32 = sbr.rel (0) target = $region25
    $region24: #{forward.1} parent=1 // pred_region
      %33 = dma.done [#allocation3], 9216
    $region25: #{forward.1} parent=1 // pred_fallthru
      _
    %v35 = vld [vmem:[%s0] sm:$0xf]
    %v36 = vld [vmem:[%s0 + $0x4] sm:$0xf]
    %v37 = vld [vmem:[%s0 + $0x8] sm:$0xf]
    %v38 = vld [vmem:[%s0 + $0xc] sm:$0xf]
    %v39 = vld [vmem:[%s0 + $0x10] sm:$0xf]
    %v40 = vld [vmem:[%s0 + $0x14] sm:$0xf]
    %v41 = vld [vmem:[%s0 + $0x18] sm:$0xf]
    %v42 = vld [vmem:[%s0 + $0x1c] sm:$0xf]
    %v43 = vld [vmem:[%s0 + $0x20] sm:$0xf]
    %v44 = vld [vmem:[%s0 + $0x24] sm:$0xf]
    %v45 = vld [vmem:[%s0 + $0x28] sm:$0xf]
    %v46 = vld [vmem:[%s0 + $0x2c] sm:$0xf]
    %v47 = vld [vmem:[%s0 + $0x30] sm:$0xf]
    %v48 = vld [vmem:[%s0 + $0x34] sm:$0xf]
    %v49 = vld [vmem:[%s0 + $0x38] sm:$0xf]
    %v50 = vld [vmem:[%s0 + $0x3c] sm:$0xf]
    %v51 = vld [vmem:[#allocation2] sm:$0xf]
    %v52 = vld [vmem:[#allocation2 + $0x4] sm:$0xf]
    %v53 = vld [vmem:[#allocation2 + $0x8] sm:$0xf]
    %v54 = vld [vmem:[#allocation2 + $0xc] sm:$0xf]
    %v55 = vld [vmem:[#allocation2 + $0x10] sm:$0xf]
    %v56 = vld [vmem:[#allocation2 + $0x14] sm:$0xf]
    %v57 = vld [vmem:[#allocation2 + $0x18] sm:$0xf]
    %v58 = vld [vmem:[#allocation2 + $0x1c] sm:$0xf]
    %v59 = vld [vmem:[#allocation2 + $0x20] sm:$0xf]
    %v60 = vld [vmem:[#allocation2 + $0x24] sm:$0xf]
    %v61 = vld [vmem:[#allocation2 + $0x28] sm:$0xf]
    %v62 = vld [vmem:[#allocation2 + $0x2c] sm:$0xf]
    %v63 = vld [vmem:[#allocation2 + $0x30] sm:$0xf]
    %v64 = vld [vmem:[#allocation2 + $0x34] sm:$0xf]
    %v65 = vld [vmem:[#allocation2 + $0x38] sm:$0xf]
    %v66 = vld [vmem:[#allocation2 + $0x3c] sm:$0xf]
    %v67 = vld [vmem:[%s4] sm:$0x1]
    %v69 = vlaneseq
    %v70 = vshrl.u32 %v69, 7
    %v71 = vsub.s32 0, %v70
    %v72 = vrot.slane %v67, %v71
    %v90 = vunpack.c.l.b16 %v35
    %v91 = vunpack.c.l.b16 %v36
    %v92 = vunpack.c.l.b16 %v37
    %v93 = vunpack.c.l.b16 %v38
    %v94 = vunpack.c.l.b16 %v39
    %v95 = vunpack.c.l.b16 %v40
    %v96 = vunpack.c.l.b16 %v41
    %v97 = vunpack.c.l.b16 %v42
    %v98 = vunpack.c.l.b16 %v43
    %v99 = vunpack.c.l.b16 %v44
    %v100 = vunpack.c.l.b16 %v45
    %v101 = vunpack.c.l.b16 %v46
    %v102 = vunpack.c.l.b16 %v47
    %v103 = vunpack.c.l.b16 %v48
    %v104 = vunpack.c.l.b16 %v49
    %v105 = vunpack.c.l.b16 %v50
    %v106 = vpack.c.b16 %v91, %v90
    %v107 = vpack.c.b16 %v93, %v92
    %v108 = vpack.c.b16 %v95, %v94
    %v109 = vpack.c.b16 %v97, %v96
    %v110 = vpack.c.b16 %v99, %v98
    %v111 = vpack.c.b16 %v101, %v100
    %v112 = vpack.c.b16 %v103, %v102
    %v113 = vpack.c.b16 %v105, %v104
    %v138 = vunpack.c.l.b16 %v51
    %v139 = vunpack.c.l.b16 %v52
    %v140 = vunpack.c.l.b16 %v53
    %v141 = vunpack.c.l.b16 %v54
    %v142 = vunpack.c.l.b16 %v55
    %v143 = vunpack.c.l.b16 %v56
    %v144 = vunpack.c.l.b16 %v57
    %v145 = vunpack.c.l.b16 %v58
    %v146 = vunpack.c.l.b16 %v59
    %v147 = vunpack.c.l.b16 %v60
    %v148 = vunpack.c.l.b16 %v61
    %v149 = vunpack.c.l.b16 %v62
    %v150 = vunpack.c.l.b16 %v63
    %v151 = vunpack.c.l.b16 %v64
    %v152 = vunpack.c.l.b16 %v65
    %v153 = vunpack.c.l.b16 %v66
    %v154 = vpack.c.b16 %v139, %v138
    %v155 = vpack.c.b16 %v141, %v140
    %v156 = vpack.c.b16 %v143, %v142
    %v157 = vpack.c.b16 %v145, %v144
    %v158 = vpack.c.b16 %v147, %v146
    %v159 = vpack.c.b16 %v149, %v148
    %v160 = vpack.c.b16 %v151, %v150
    %v161 = vpack.c.b16 %v153, %v152
    %170 = vmatprep.subr.bf16.mxu0 0
    %171 = vmatpush1.bf16.msra.mxu0 %v154
    %172 = vmatprep.subr.bf16.mxu0 0
    %173 = vmatpush1.bf16.msra.mxu0 %v155
    %174 = vmatprep.subr.bf16.mxu0 0
    %175 = vmatpush1.bf16.msra.mxu0 %v156
    %176 = vmatprep.subr.bf16.mxu0 0
    %177 = vmatpush1.bf16.msra.mxu0 %v157
    %178 = vmatprep.subr.bf16.mxu0 0
    %179 = vmatpush1.bf16.msra.mxu0 %v158
    %180 = vmatprep.subr.bf16.mxu0 0
    %181 = vmatpush1.bf16.msra.mxu0 %v159
    %182 = vmatprep.subr.bf16.mxu0 0
    %183 = vmatpush1.bf16.msra.mxu0 %v160
    %184 = vmatprep.subr.bf16.mxu0 0
    %185 = vmatpush1.bf16.msra.mxu0 %v161
    %186 = vmatprep.subr.bf16.mxu0 0
    %187 = vmatpush1.bf16.msra.mxu0 0
    %188 = vmatprep.subr.bf16.mxu0 0
    %189 = vmatpush1.bf16.msra.mxu0 0
    %190 = vmatprep.subr.bf16.mxu0 0
    %191 = vmatpush1.bf16.msra.mxu0 0
    %192 = vmatprep.subr.bf16.mxu0 0
    %193 = vmatpush1.bf16.msra.mxu0 0
    %194 = vmatprep.subr.bf16.mxu0 0
    %195 = vmatpush1.bf16.msra.mxu0 0
    %196 = vmatprep.subr.bf16.mxu0 0
    %197 = vmatpush1.bf16.msra.mxu0 0
    %198 = vmatprep.subr.bf16.mxu0 0
    %199 = vmatpush1.bf16.msra.mxu0 0
    %200 = vmatprep.subr.bf16.mxu0 0
    %201 = vmatpush1.bf16.msra.mxu0 0
    %202 = vmatprep.mubr.bf16.mxu0 0
    %203 = vmatmul.mubr.bf16.gmra.mrb[0].mxu0 %v106
    %v204 = vpop.f32.mrb[0].mxu0
    %v205 = vadd.f32 %v72, %v204
    %v206 = vpop.f32.mrb[0].mxu0
    %v207 = vpop.f32.mrb[0].mxu0
    %v208 = vadd.f32 %v72, %v207
    %v209 = vpop.f32.mrb[0].mxu0
    %210 = vmatprep.mubr.bf16.mxu0 0
    %211 = vmatmul.mubr.bf16.gmra.mrb[0].mxu0 %v107
    %v212 = vpop.f32.mrb[0].mxu0
    %v213 = vadd.f32 %v72, %v212
    %v214 = vpop.f32.mrb[0].mxu0
    %v215 = vpop.f32.mrb[0].mxu0
    %v216 = vadd.f32 %v72, %v215
    %v217 = vpop.f32.mrb[0].mxu0
    %218 = vmatprep.mubr.bf16.mxu0 0
    %219 = vmatmul.mubr.bf16.gmra.mrb[0].mxu0 %v108
    %v220 = vpop.f32.mrb[0].mxu0
    %v221 = vadd.f32 %v72, %v220
    %v222 = vpop.f32.mrb[0].mxu0
    %v223 = vpop.f32.mrb[0].mxu0
    %v224 = vadd.f32 %v72, %v223
    %v225 = vpop.f32.mrb[0].mxu0
    %226 = vmatprep.mubr.bf16.mxu0 0
    %227 = vmatmul.mubr.bf16.gmra.mrb[0].mxu0 %v109
    %v228 = vpop.f32.mrb[0].mxu0
    %v229 = vadd.f32 %v72, %v228
    %v230 = vpop.f32.mrb[0].mxu0
    %v231 = vpop.f32.mrb[0].mxu0
    %v232 = vadd.f32 %v72, %v231
    %v233 = vpop.f32.mrb[0].mxu0
    %234 = vmatprep.mubr.bf16.mxu0 0
    %235 = vmatmul.mubr.bf16.gmra.mrb[0].mxu0 %v110
    %v236 = vpop.f32.mrb[0].mxu0
    %v237 = vadd.f32 %v72, %v236
    %v238 = vpop.f32.mrb[0].mxu0
    %v239 = vpop.f32.mrb[0].mxu0
    %v240 = vadd.f32 %v72, %v239
    %v241 = vpop.f32.mrb[0].mxu0
    %242 = vmatprep.mubr.bf16.mxu0 0
    %243 = vmatmul.mubr.bf16.gmra.mrb[0].mxu0 %v111
    %v244 = vpop.f32.mrb[0].mxu0
    %v245 = vadd.f32 %v72, %v244
    %v246 = vpop.f32.mrb[0].mxu0
    %v247 = vpop.f32.mrb[0].mxu0
    %v248 = vadd.f32 %v72, %v247
    %v249 = vpop.f32.mrb[0].mxu0
    %250 = vmatprep.mubr.bf16.mxu0 0
    %251 = vmatmul.mubr.bf16.gmra.mrb[0].mxu0 %v112
    %v252 = vpop.f32.mrb[0].mxu0
    %v253 = vadd.f32 %v72, %v252
    %v254 = vpop.f32.mrb[0].mxu0
    %v255 = vpop.f32.mrb[0].mxu0
    %v256 = vadd.f32 %v72, %v255
    %v257 = vpop.f32.mrb[0].mxu0
    %258 = vmatprep.mubr.bf16.mxu0 0
    %259 = vmatmul.mubr.bf16.gmra.mrb[0].mxu0 %v113
    %v260 = vpop.f32.mrb[0].mxu0
    %v261 = vadd.f32 %v72, %v260
    %v262 = vpop.f32.mrb[0].mxu0
    %v263 = vpop.f32.mrb[0].mxu0
    %v264 = vadd.f32 %v72, %v263
    %v265 = vpop.f32.mrb[0].mxu0
    %266 = vdwg.mxu0
    %v267 = vmax.f32 %v205, 0.0
    %v268 = vmax.f32 %v208, 0.0
    %v269 = vmax.f32 %v213, 0.0
    %v270 = vmax.f32 %v216, 0.0
    %v271 = vmax.f32 %v221, 0.0
    %v272 = vmax.f32 %v224, 0.0
    %v273 = vmax.f32 %v229, 0.0
    %v274 = vmax.f32 %v232, 0.0
    %v275 = vmax.f32 %v237, 0.0
    %v276 = vmax.f32 %v240, 0.0
    %v277 = vmax.f32 %v245, 0.0
    %v278 = vmax.f32 %v248, 0.0
    %v279 = vmax.f32 %v253, 0.0
    %v280 = vmax.f32 %v256, 0.0
    %v281 = vmax.f32 %v261, 0.0
    %v282 = vmax.f32 %v264, 0.0
    %v283 = vpack.c.bf16 %v268, %v267
    %v284 = vpack.c.bf16 %v270, %v269
    %v285 = vpack.c.bf16 %v272, %v271
    %v286 = vpack.c.bf16 %v274, %v273
    %v287 = vpack.c.bf16 %v276, %v275
    %v288 = vpack.c.bf16 %v278, %v277
    %v289 = vpack.c.bf16 %v280, %v279
    %v290 = vpack.c.bf16 %v282, %v281
    %s291 = scalar_lea.vmem [#allocation2], 64
    %v292 = vld [vmem:[%s291] sm:$0xf]
    %v293 = vld [vmem:[%s291 + $0x4] sm:$0xf]
    %v294 = vld [vmem:[%s291 + $0x8] sm:$0xf]
    %v295 = vld [vmem:[%s291 + $0xc] sm:$0xf]
    %v296 = vld [vmem:[%s291 + $0x10] sm:$0xf]
    %v297 = vld [vmem:[%s291 + $0x14] sm:$0xf]
    %v298 = vld [vmem:[%s291 + $0x18] sm:$0xf]
    %v299 = vld [vmem:[%s291 + $0x1c] sm:$0xf]
    %v300 = vld [vmem:[%s291 + $0x20] sm:$0xf]
    %v301 = vld [vmem:[%s291 + $0x24] sm:$0xf]
    %v302 = vld [vmem:[%s291 + $0x28] sm:$0xf]
    %v303 = vld [vmem:[%s291 + $0x2c] sm:$0xf]
    %v304 = vld [vmem:[%s291 + $0x30] sm:$0xf]
    %v305 = vld [vmem:[%s291 + $0x34] sm:$0xf]
    %v306 = vld [vmem:[%s291 + $0x38] sm:$0xf]
    %v307 = vld [vmem:[%s291 + $0x3c] sm:$0xf]
    %s308 = scalar_lea.vmem %s4, 1
    %v309 = vld [vmem:[%s308] sm:$0x1]
    %v311 = vlaneseq
    %v312 = vshrl.u32 %v311, 7
    %v313 = vsub.s32 0, %v312
    %v314 = vrot.slane %v309, %v313
    %v332 = vunpack.c.l.b16 %v292
    %v333 = vunpack.c.l.b16 %v293
    %v334 = vunpack.c.l.b16 %v294
    %v335 = vunpack.c.l.b16 %v295
    %v336 = vunpack.c.l.b16 %v296
    %v337 = vunpack.c.l.b16 %v297
    %v338 = vunpack.c.l.b16 %v298
    %v339 = vunpack.c.l.b16 %v299
    %v340 = vunpack.c.l.b16 %v300
    %v341 = vunpack.c.l.b16 %v301
    %v342 = vunpack.c.l.b16 %v302
    %v343 = vunpack.c.l.b16 %v303
    %v344 = vunpack.c.l.b16 %v304
    %v345 = vunpack.c.l.b16 %v305
    %v346 = vunpack.c.l.b16 %v306
    %v347 = vunpack.c.l.b16 %v307
    %v348 = vpack.c.b16 %v333, %v332
    %v349 = vpack.c.b16 %v335, %v334
    %v350 = vpack.c.b16 %v337, %v336
    %v351 = vpack.c.b16 %v339, %v338
    %v352 = vpack.c.b16 %v341, %v340
    %v353 = vpack.c.b16 %v343, %v342
    %v354 = vpack.c.b16 %v345, %v344
    %v355 = vpack.c.b16 %v347, %v346
    %364 = vmatprep.subr.bf16.mxu0 0
    %365 = vmatpush1.bf16.msra.mxu0 %v348
    %366 = vmatprep.subr.bf16.mxu0 0
    %367 = vmatpush1.bf16.msra.mxu0 %v349
    %368 = vmatprep.subr.bf16.mxu0 0
    %369 = vmatpush1.bf16.msra.mxu0 %v350
    %370 = vmatprep.subr.bf16.mxu0 0
    %371 = vmatpush1.bf16.msra.mxu0 %v351
    %372 = vmatprep.subr.bf16.mxu0 0
    %373 = vmatpush1.bf16.msra.mxu0 %v352
    %374 = vmatprep.subr.bf16.mxu0 0
    %375 = vmatpush1.bf16.msra.mxu0 %v353
    %376 = vmatprep.subr.bf16.mxu0 0
    %377 = vmatpush1.bf16.msra.mxu0 %v354
    %378 = vmatprep.subr.bf16.mxu0 0
    %379 = vmatpush1.bf16.msra.mxu0 %v355
    %380 = vmatprep.subr.bf16.mxu0 0
    %381 = vmatpush1.bf16.msra.mxu0 0
    %382 = vmatprep.subr.bf16.mxu0 0
    %383 = vmatpush1.bf16.msra.mxu0 0
    %384 = vmatprep.subr.bf16.mxu0 0
    %385 = vmatpush1.bf16.msra.mxu0 0
    %386 = vmatprep.subr.bf16.mxu0 0
    %387 = vmatpush1.bf16.msra.mxu0 0
    %388 = vmatprep.subr.bf16.mxu0 0
    %389 = vmatpush1.bf16.msra.mxu0 0
    %390 = vmatprep.subr.bf16.mxu0 0
    %391 = vmatpush1.bf16.msra.mxu0 0
    %392 = vmatprep.subr.bf16.mxu0 0
    %393 = vmatpush1.bf16.msra.mxu0 0
    %394 = vmatprep.subr.bf16.mxu0 0
    %395 = vmatpush1.bf16.msra.mxu0 0
    %396 = vmatprep.mubr.bf16.mxu0 0
    %397 = vmatmul.mubr.bf16.gmra.mrb[0].mxu0 %v283
    %v398 = vpop.f32.mrb[0].mxu0
    %v399 = vadd.f32 %v314, %v398
    %v400 = vpop.f32.mrb[0].mxu0
    %v401 = vpop.f32.mrb[0].mxu0
    %v402 = vadd.f32 %v314, %v401
    %v403 = vpop.f32.mrb[0].mxu0
    %404 = vmatprep.mubr.bf16.mxu0 0
    %405 = vmatmul.mubr.bf16.gmra.mrb[0].mxu0 %v284
    %v406 = vpop.f32.mrb[0].mxu0
    %v407 = vadd.f32 %v314, %v406
    %v408 = vpop.f32.mrb[0].mxu0
    %v409 = vpop.f32.mrb[0].mxu0
    %v410 = vadd.f32 %v314, %v409
    %v411 = vpop.f32.mrb[0].mxu0
    %412 = vmatprep.mubr.bf16.mxu0 0
    %413 = vmatmul.mubr.bf16.gmra.mrb[0].mxu0 %v285
    %v414 = vpop.f32.mrb[0].mxu0
    %v415 = vadd.f32 %v314, %v414
    %v416 = vpop.f32.mrb[0].mxu0
    %v417 = vpop.f32.mrb[0].mxu0
    %v418 = vadd.f32 %v314, %v417
    %v419 = vpop.f32.mrb[0].mxu0
    %420 = vmatprep.mubr.bf16.mxu0 0
    %421 = vmatmul.mubr.bf16.gmra.mrb[0].mxu0 %v286
    %v422 = vpop.f32.mrb[0].mxu0
    %v423 = vadd.f32 %v314, %v422
    %v424 = vpop.f32.mrb[0].mxu0
    %v425 = vpop.f32.mrb[0].mxu0
    %v426 = vadd.f32 %v314, %v425
    %v427 = vpop.f32.mrb[0].mxu0
    %428 = vmatprep.mubr.bf16.mxu0 0
    %429 = vmatmul.mubr.bf16.gmra.mrb[0].mxu0 %v287
    %v430 = vpop.f32.mrb[0].mxu0
    %v431 = vadd.f32 %v314, %v430
    %v432 = vpop.f32.mrb[0].mxu0
    %v433 = vpop.f32.mrb[0].mxu0
    %v434 = vadd.f32 %v314, %v433
    %v435 = vpop.f32.mrb[0].mxu0
    %436 = vmatprep.mubr.bf16.mxu0 0
    %437 = vmatmul.mubr.bf16.gmra.mrb[0].mxu0 %v288
    %v438 = vpop.f32.mrb[0].mxu0
    %v439 = vadd.f32 %v314, %v438
    %v440 = vpop.f32.mrb[0].mxu0
    %v441 = vpop.f32.mrb[0].mxu0
    %v442 = vadd.f32 %v314, %v441
    %v443 = vpop.f32.mrb[0].mxu0
    %444 = vmatprep.mubr.bf16.mxu0 0
    %445 = vmatmul.mubr.bf16.gmra.mrb[0].mxu0 %v289
    %v446 = vpop.f32.mrb[0].mxu0
    %v447 = vadd.f32 %v314, %v446
    %v448 = vpop.f32.mrb[0].mxu0
    %v449 = vpop.f32.mrb[0].mxu0
    %v450 = vadd.f32 %v314, %v449
    %v451 = vpop.f32.mrb[0].mxu0
    %452 = vmatprep.mubr.bf16.mxu0 0
    %453 = vmatmul.mubr.bf16.gmra.mrb[0].mxu0 %v290
    %v454 = vpop.f32.mrb[0].mxu0
    %v455 = vadd.f32 %v314, %v454
    %v456 = vpop.f32.mrb[0].mxu0
    %v457 = vpop.f32.mrb[0].mxu0
    %v458 = vadd.f32 %v314, %v457
    %v459 = vpop.f32.mrb[0].mxu0
    %460 = vdwg.mxu0
    %v461 = vmax.f32 %v399, 0.0
    %v462 = vmax.f32 %v402, 0.0
    %v463 = vmax.f32 %v407, 0.0
    %v464 = vmax.f32 %v410, 0.0
    %v465 = vmax.f32 %v415, 0.0
    %v466 = vmax.f32 %v418, 0.0
    %v467 = vmax.f32 %v423, 0.0
    %v468 = vmax.f32 %v426, 0.0
    %v469 = vmax.f32 %v431, 0.0
    %v470 = vmax.f32 %v434, 0.0
    %v471 = vmax.f32 %v439, 0.0
    %v472 = vmax.f32 %v442, 0.0
    %v473 = vmax.f32 %v447, 0.0
    %v474 = vmax.f32 %v450, 0.0
    %v475 = vmax.f32 %v455, 0.0
    %v476 = vmax.f32 %v458, 0.0
    %v477 = vpack.c.bf16 %v462, %v461
    %v478 = vpack.c.bf16 %v464, %v463
    %v479 = vpack.c.bf16 %v466, %v465
    %v480 = vpack.c.bf16 %v468, %v467
    %v481 = vpack.c.bf16 %v470, %v469
    %v482 = vpack.c.bf16 %v472, %v471
    %v483 = vpack.c.bf16 %v474, %v473
    %v484 = vpack.c.bf16 %v476, %v475
    %v485 = vld [vmem:[%s1] sm:$0xf]
    %v486 = vld [vmem:[%s1 + $0x4] sm:$0xf]
    %v487 = vld [vmem:[%s1 + $0x8] sm:$0xf]
    %v488 = vld [vmem:[%s1 + $0xc] sm:$0xf]
    %v489 = vld [vmem:[%s1 + $0x10] sm:$0xf]
    %v490 = vld [vmem:[%s1 + $0x14] sm:$0xf]
    %v491 = vld [vmem:[%s1 + $0x18] sm:$0xf]
    %v492 = vld [vmem:[%s1 + $0x1c] sm:$0xf]
    %v493 = vld [vmem:[%s1 + $0x20] sm:$0xf]
    %v494 = vld [vmem:[%s1 + $0x24] sm:$0xf]
    %v495 = vld [vmem:[%s1 + $0x28] sm:$0xf]
    %v496 = vld [vmem:[%s1 + $0x2c] sm:$0xf]
    %v497 = vld [vmem:[%s1 + $0x30] sm:$0xf]
    %v498 = vld [vmem:[%s1 + $0x34] sm:$0xf]
    %v499 = vld [vmem:[%s1 + $0x38] sm:$0xf]
    %v500 = vld [vmem:[%s1 + $0x3c] sm:$0xf]
    %v517 = vunpack.c.l.b16 %v485
    %v518 = vunpack.c.l.b16 %v486
    %v519 = vunpack.c.l.b16 %v487
    %v520 = vunpack.c.l.b16 %v488
    %v521 = vunpack.c.l.b16 %v489
    %v522 = vunpack.c.l.b16 %v490
    %v523 = vunpack.c.l.b16 %v491
    %v524 = vunpack.c.l.b16 %v492
    %v525 = vunpack.c.l.b16 %v493
    %v526 = vunpack.c.l.b16 %v494
    %v527 = vunpack.c.l.b16 %v495
    %v528 = vunpack.c.l.b16 %v496
    %v529 = vunpack.c.l.b16 %v497
    %v530 = vunpack.c.l.b16 %v498
    %v531 = vunpack.c.l.b16 %v499
    %v532 = vunpack.c.l.b16 %v500
    %v533 = vpack.c.b16 %v518, %v517
    %v534 = vpack.c.b16 %v520, %v519
    %v535 = vpack.c.b16 %v522, %v521
    %v536 = vpack.c.b16 %v524, %v523
    %v537 = vpack.c.b16 %v526, %v525
    %v538 = vpack.c.b16 %v528, %v527
    %v539 = vpack.c.b16 %v530, %v529
    %v540 = vpack.c.b16 %v532, %v531
    %549 = vmatprep.subr.bf16.mxu0 0
    %550 = vmatpush1.bf16.msra.mxu0 %v477
    %551 = vmatprep.subr.bf16.mxu0 0
    %552 = vmatpush1.bf16.msra.mxu0 %v478
    %553 = vmatprep.subr.bf16.mxu0 0
    %554 = vmatpush1.bf16.msra.mxu0 %v479
    %555 = vmatprep.subr.bf16.mxu0 0
    %556 = vmatpush1.bf16.msra.mxu0 %v480
    %557 = vmatprep.subr.bf16.mxu0 0
    %558 = vmatpush1.bf16.msra.mxu0 %v481
    %559 = vmatprep.subr.bf16.mxu0 0
    %560 = vmatpush1.bf16.msra.mxu0 %v482
    %561 = vmatprep.subr.bf16.mxu0 0
    %562 = vmatpush1.bf16.msra.mxu0 %v483
    %563 = vmatprep.subr.bf16.mxu0 0
    %564 = vmatpush1.bf16.msra.mxu0 %v484
    %565 = vmatprep.subr.bf16.mxu0 0
    %566 = vmatpush1.bf16.msra.mxu0 0
    %567 = vmatprep.subr.bf16.mxu0 0
    %568 = vmatpush1.bf16.msra.mxu0 0
    %569 = vmatprep.subr.bf16.mxu0 0
    %570 = vmatpush1.bf16.msra.mxu0 0
    %571 = vmatprep.subr.bf16.mxu0 0
    %572 = vmatpush1.bf16.msra.mxu0 0
    %573 = vmatprep.subr.bf16.mxu0 0
    %574 = vmatpush1.bf16.msra.mxu0 0
    %575 = vmatprep.subr.bf16.mxu0 0
    %576 = vmatpush1.bf16.msra.mxu0 0
    %577 = vmatprep.subr.bf16.mxu0 0
    %578 = vmatpush1.bf16.msra.mxu0 0
    %579 = vmatprep.subr.bf16.mxu0 0
    %580 = vmatpush1.bf16.msra.mxu0 0
    %581 = vmatprep.mubr.bf16.mxu0 0
    %582 = vmatmul.mubr.bf16.gmra.mrb[0].mxu0 %v533
    %v583 = vpop.f32.mrb[0].mxu0
    %v584 = vadd.f32 0.0, %v583
    %v585 = vpop.f32.mrb[0].mxu0
    %v586 = vpop.f32.mrb[0].mxu0
    %v587 = vadd.f32 0.0, %v586
    %v588 = vpop.f32.mrb[0].mxu0
    %589 = vmatprep.mubr.bf16.mxu0 0
    %590 = vmatmul.mubr.bf16.gmra.mrb[0].mxu0 %v534
    %v591 = vpop.f32.mrb[0].mxu0
    %v592 = vadd.f32 0.0, %v591
    %v593 = vpop.f32.mrb[0].mxu0
    %v594 = vpop.f32.mrb[0].mxu0
    %v595 = vadd.f32 0.0, %v594
    %v596 = vpop.f32.mrb[0].mxu0
    %597 = vmatprep.mubr.bf16.mxu0 0
    %598 = vmatmul.mubr.bf16.gmra.mrb[0].mxu0 %v535
    %v599 = vpop.f32.mrb[0].mxu0
    %v600 = vadd.f32 0.0, %v599
    %v601 = vpop.f32.mrb[0].mxu0
    %v602 = vpop.f32.mrb[0].mxu0
    %v603 = vadd.f32 0.0, %v602
    %v604 = vpop.f32.mrb[0].mxu0
    %605 = vmatprep.mubr.bf16.mxu0 0
    %606 = vmatmul.mubr.bf16.gmra.mrb[0].mxu0 %v536
    %v607 = vpop.f32.mrb[0].mxu0
    %v608 = vadd.f32 0.0, %v607
    %v609 = vpop.f32.mrb[0].mxu0
    %v610 = vpop.f32.mrb[0].mxu0
    %v611 = vadd.f32 0.0, %v610
    %v612 = vpop.f32.mrb[0].mxu0
    %613 = vmatprep.mubr.bf16.mxu0 0
    %614 = vmatmul.mubr.bf16.gmra.mrb[0].mxu0 %v537
    %v615 = vpop.f32.mrb[0].mxu0
    %v616 = vadd.f32 0.0, %v615
    %v617 = vpop.f32.mrb[0].mxu0
    %v618 = vpop.f32.mrb[0].mxu0
    %v619 = vadd.f32 0.0, %v618
    %v620 = vpop.f32.mrb[0].mxu0
    %621 = vmatprep.mubr.bf16.mxu0 0
    %622 = vmatmul.mubr.bf16.gmra.mrb[0].mxu0 %v538
    %v623 = vpop.f32.mrb[0].mxu0
    %v624 = vadd.f32 0.0, %v623
    %v625 = vpop.f32.mrb[0].mxu0
    %v626 = vpop.f32.mrb[0].mxu0
    %v627 = vadd.f32 0.0, %v626
    %v628 = vpop.f32.mrb[0].mxu0
    %629 = vmatprep.mubr.bf16.mxu0 0
    %630 = vmatmul.mubr.bf16.gmra.mrb[0].mxu0 %v539
    %v631 = vpop.f32.mrb[0].mxu0
    %v632 = vadd.f32 0.0, %v631
    %v633 = vpop.f32.mrb[0].mxu0
    %v634 = vpop.f32.mrb[0].mxu0
    %v635 = vadd.f32 0.0, %v634
    %v636 = vpop.f32.mrb[0].mxu0
    %637 = vmatprep.mubr.bf16.mxu0 0
    %638 = vmatmul.mubr.bf16.gmra.mrb[0].mxu0 %v540
    %v639 = vpop.f32.mrb[0].mxu0
    %v640 = vadd.f32 0.0, %v639
    %v641 = vpop.f32.mrb[0].mxu0
    %v642 = vpop.f32.mrb[0].mxu0
    %v643 = vadd.f32 0.0, %v642
    %v644 = vpop.f32.mrb[0].mxu0
    %645 = vdwg.mxu0
    %v646 = vpack.c.bf16 %v587, %v584
    %v647 = vpack.c.bf16 %v595, %v592
    %v648 = vpack.c.bf16 %v603, %v600
    %v649 = vpack.c.bf16 %v611, %v608
    %v650 = vpack.c.bf16 %v619, %v616
    %v651 = vpack.c.bf16 %v627, %v624
    %v652 = vpack.c.bf16 %v635, %v632
    %v653 = vpack.c.bf16 %v643, %v640
    %s654 = scalar_lea.vmem [#allocation2], 128
    %v655 = vld [vmem:[%s654] sm:$0xf]
    %v656 = vld [vmem:[%s654 + $0x4] sm:$0xf]
    %v657 = vld [vmem:[%s654 + $0x8] sm:$0xf]
    %v658 = vld [vmem:[%s654 + $0xc] sm:$0xf]
    %v659 = vld [vmem:[%s654 + $0x10] sm:$0xf]
    %v660 = vld [vmem:[%s654 + $0x14] sm:$0xf]
    %v661 = vld [vmem:[%s654 + $0x18] sm:$0xf]
    %v662 = vld [vmem:[%s654 + $0x1c] sm:$0xf]
    %v663 = vld [vmem:[%s654 + $0x20] sm:$0xf]
    %v664 = vld [vmem:[%s654 + $0x24] sm:$0xf]
    %v665 = vld [vmem:[%s654 + $0x28] sm:$0xf]
    %v666 = vld [vmem:[%s654 + $0x2c] sm:$0xf]
    %v667 = vld [vmem:[%s654 + $0x30] sm:$0xf]
    %v668 = vld [vmem:[%s654 + $0x34] sm:$0xf]
    %v669 = vld [vmem:[%s654 + $0x38] sm:$0xf]
    %v670 = vld [vmem:[%s654 + $0x3c] sm:$0xf]
    %s671 = scalar_lea.vmem %s4, 2
    %v672 = vld [vmem:[%s671] sm:$0x1]
    %v674 = vlaneseq
    %v675 = vshrl.u32 %v674, 7
    %v676 = vsub.s32 0, %v675
    %v677 = vrot.slane %v672, %v676
    %v695 = vunpack.c.l.b16 %v655
    %v696 = vunpack.c.l.b16 %v656
    %v697 = vunpack.c.l.b16 %v657
    %v698 = vunpack.c.l.b16 %v658
    %v699 = vunpack.c.l.b16 %v659
    %v700 = vunpack.c.l.b16 %v660
    %v701 = vunpack.c.l.b16 %v661
    %v702 = vunpack.c.l.b16 %v662
    %v703 = vunpack.c.l.b16 %v663
    %v704 = vunpack.c.l.b16 %v664
    %v705 = vunpack.c.l.b16 %v665
    %v706 = vunpack.c.l.b16 %v666
    %v707 = vunpack.c.l.b16 %v667
    %v708 = vunpack.c.l.b16 %v668
    %v709 = vunpack.c.l.b16 %v669
    %v710 = vunpack.c.l.b16 %v670
    %v711 = vpack.c.b16 %v696, %v695
    %v712 = vpack.c.b16 %v698, %v697
    %v713 = vpack.c.b16 %v700, %v699
    %v714 = vpack.c.b16 %v702, %v701
    %v715 = vpack.c.b16 %v704, %v703
    %v716 = vpack.c.b16 %v706, %v705
    %v717 = vpack.c.b16 %v708, %v707
    %v718 = vpack.c.b16 %v710, %v709
    %727 = vmatprep.subr.bf16.mxu0 0
    %728 = vmatpush1.bf16.msra.mxu0 %v711
    %729 = vmatprep.subr.bf16.mxu0 0
    %730 = vmatpush1.bf16.msra.mxu0 %v712
    %731 = vmatprep.subr.bf16.mxu0 0
    %732 = vmatpush1.bf16.msra.mxu0 %v713
    %733 = vmatprep.subr.bf16.mxu0 0
    %734 = vmatpush1.bf16.msra.mxu0 %v714
    %735 = vmatprep.subr.bf16.mxu0 0
    %736 = vmatpush1.bf16.msra.mxu0 %v715
    %737 = vmatprep.subr.bf16.mxu0 0
    %738 = vmatpush1.bf16.msra.mxu0 %v716
    %739 = vmatprep.subr.bf16.mxu0 0
    %740 = vmatpush1.bf16.msra.mxu0 %v717
    %741 = vmatprep.subr.bf16.mxu0 0
    %742 = vmatpush1.bf16.msra.mxu0 %v718
    %743 = vmatprep.subr.bf16.mxu0 0
    %744 = vmatpush1.bf16.msra.mxu0 0
    %745 = vmatprep.subr.bf16.mxu0 0
    %746 = vmatpush1.bf16.msra.mxu0 0
    %747 = vmatprep.subr.bf16.mxu0 0
    %748 = vmatpush1.bf16.msra.mxu0 0
    %749 = vmatprep.subr.bf16.mxu0 0
    %750 = vmatpush1.bf16.msra.mxu0 0
    %751 = vmatprep.subr.bf16.mxu0 0
    %752 = vmatpush1.bf16.msra.mxu0 0
    %753 = vmatprep.subr.bf16.mxu0 0
    %754 = vmatpush1.bf16.msra.mxu0 0
    %755 = vmatprep.subr.bf16.mxu0 0
    %756 = vmatpush1.bf16.msra.mxu0 0
    %757 = vmatprep.subr.bf16.mxu0 0
    %758 = vmatpush1.bf16.msra.mxu0 0
    %759 = vmatprep.mubr.bf16.mxu0 0
    %760 = vmatmul.mubr.bf16.gmra.mrb[0].mxu0 %v646
    %v761 = vpop.f32.mrb[0].mxu0
    %v762 = vadd.f32 %v677, %v761
    %v763 = vpop.f32.mrb[0].mxu0
    %v764 = vpop.f32.mrb[0].mxu0
    %v765 = vadd.f32 %v677, %v764
    %v766 = vpop.f32.mrb[0].mxu0
    %767 = vmatprep.mubr.bf16.mxu0 0
    %768 = vmatmul.mubr.bf16.gmra.mrb[0].mxu0 %v647
    %v769 = vpop.f32.mrb[0].mxu0
    %v770 = vadd.f32 %v677, %v769
    %v771 = vpop.f32.mrb[0].mxu0
    %v772 = vpop.f32.mrb[0].mxu0
    %v773 = vadd.f32 %v677, %v772
    %v774 = vpop.f32.mrb[0].mxu0
    %775 = vmatprep.mubr.bf16.mxu0 0
    %776 = vmatmul.mubr.bf16.gmra.mrb[0].mxu0 %v648
    %v777 = vpop.f32.mrb[0].mxu0
    %v778 = vadd.f32 %v677, %v777
    %v779 = vpop.f32.mrb[0].mxu0
    %v780 = vpop.f32.mrb[0].mxu0
    %v781 = vadd.f32 %v677, %v780
    %v782 = vpop.f32.mrb[0].mxu0
    %783 = vmatprep.mubr.bf16.mxu0 0
    %784 = vmatmul.mubr.bf16.gmra.mrb[0].mxu0 %v649
    %v785 = vpop.f32.mrb[0].mxu0
    %v786 = vadd.f32 %v677, %v785
    %v787 = vpop.f32.mrb[0].mxu0
    %v788 = vpop.f32.mrb[0].mxu0
    %v789 = vadd.f32 %v677, %v788
    %v790 = vpop.f32.mrb[0].mxu0
    %791 = vmatprep.mubr.bf16.mxu0 0
    %792 = vmatmul.mubr.bf16.gmra.mrb[0].mxu0 %v650
    %v793 = vpop.f32.mrb[0].mxu0
    %v794 = vadd.f32 %v677, %v793
    %v795 = vpop.f32.mrb[0].mxu0
    %v796 = vpop.f32.mrb[0].mxu0
    %v797 = vadd.f32 %v677, %v796
    %v798 = vpop.f32.mrb[0].mxu0
    %799 = vmatprep.mubr.bf16.mxu0 0
    %800 = vmatmul.mubr.bf16.gmra.mrb[0].mxu0 %v651
    %v801 = vpop.f32.mrb[0].mxu0
    %v802 = vadd.f32 %v677, %v801
    %v803 = vpop.f32.mrb[0].mxu0
    %v804 = vpop.f32.mrb[0].mxu0
    %v805 = vadd.f32 %v677, %v804
    %v806 = vpop.f32.mrb[0].mxu0
    %807 = vmatprep.mubr.bf16.mxu0 0
    %808 = vmatmul.mubr.bf16.gmra.mrb[0].mxu0 %v652
    %v809 = vpop.f32.mrb[0].mxu0
    %v810 = vadd.f32 %v677, %v809
    %v811 = vpop.f32.mrb[0].mxu0
    %v812 = vpop.f32.mrb[0].mxu0
    %v813 = vadd.f32 %v677, %v812
    %v814 = vpop.f32.mrb[0].mxu0
    %815 = vmatprep.mubr.bf16.mxu0 0
    %816 = vmatmul.mubr.bf16.gmra.mrb[0].mxu0 %v653
    %v817 = vpop.f32.mrb[0].mxu0
    %v818 = vadd.f32 %v677, %v817
    %v819 = vpop.f32.mrb[0].mxu0
    %v820 = vpop.f32.mrb[0].mxu0
    %v821 = vadd.f32 %v677, %v820
    %v822 = vpop.f32.mrb[0].mxu0
    %823 = vdwg.mxu0
    %v824 = vmax.f32 %v762, 0.0
    %v825 = vmax.f32 %v765, 0.0
    %v826 = vmax.f32 %v770, 0.0
    %v827 = vmax.f32 %v773, 0.0
    %v828 = vmax.f32 %v778, 0.0
    %v829 = vmax.f32 %v781, 0.0
    %v830 = vmax.f32 %v786, 0.0
    %v831 = vmax.f32 %v789, 0.0
    %v832 = vmax.f32 %v794, 0.0
    %v833 = vmax.f32 %v797, 0.0
    %v834 = vmax.f32 %v802, 0.0
    %v835 = vmax.f32 %v805, 0.0
    %v836 = vmax.f32 %v810, 0.0
    %v837 = vmax.f32 %v813, 0.0
    %v838 = vmax.f32 %v818, 0.0
    %v839 = vmax.f32 %v821, 0.0
    %v840 = vpack.c.bf16 %v825, %v824
    %v841 = vpack.c.bf16 %v827, %v826
    %v842 = vpack.c.bf16 %v829, %v828
    %v843 = vpack.c.bf16 %v831, %v830
    %v844 = vpack.c.bf16 %v833, %v832
    %v845 = vpack.c.bf16 %v835, %v834
    %v846 = vpack.c.bf16 %v837, %v836
    %v847 = vpack.c.bf16 %v839, %v838
    %s848 = scalar_lea.vmem [#allocation2], 192
    %v849 = vld [vmem:[%s848] sm:$0xf]
    %v850 = vld [vmem:[%s848 + $0x4] sm:$0xf]
    %v851 = vld [vmem:[%s848 + $0x8] sm:$0xf]
    %v852 = vld [vmem:[%s848 + $0xc] sm:$0xf]
    %v853 = vld [vmem:[%s848 + $0x10] sm:$0xf]
    %v854 = vld [vmem:[%s848 + $0x14] sm:$0xf]
    %v855 = vld [vmem:[%s848 + $0x18] sm:$0xf]
    %v856 = vld [vmem:[%s848 + $0x1c] sm:$0xf]
    %v857 = vld [vmem:[%s848 + $0x20] sm:$0xf]
    %v858 = vld [vmem:[%s848 + $0x24] sm:$0xf]
    %v859 = vld [vmem:[%s848 + $0x28] sm:$0xf]
    %v860 = vld [vmem:[%s848 + $0x2c] sm:$0xf]
    %v861 = vld [vmem:[%s848 + $0x30] sm:$0xf]
    %v862 = vld [vmem:[%s848 + $0x34] sm:$0xf]
    %v863 = vld [vmem:[%s848 + $0x38] sm:$0xf]
    %v864 = vld [vmem:[%s848 + $0x3c] sm:$0xf]
    %s865 = scalar_lea.vmem %s4, 3
    %v866 = vld [vmem:[%s865] sm:$0x1]
    %v868 = vlaneseq
    %v869 = vshrl.u32 %v868, 7
    %v870 = vsub.s32 0, %v869
    %v871 = vrot.slane %v866, %v870
    %v889 = vunpack.c.l.b16 %v849
    %v890 = vunpack.c.l.b16 %v850
    %v891 = vunpack.c.l.b16 %v851
    %v892 = vunpack.c.l.b16 %v852
    %v893 = vunpack.c.l.b16 %v853
    %v894 = vunpack.c.l.b16 %v854
    %v895 = vunpack.c.l.b16 %v855
    %v896 = vunpack.c.l.b16 %v856
    %v897 = vunpack.c.l.b16 %v857
    %v898 = vunpack.c.l.b16 %v858
    %v899 = vunpack.c.l.b16 %v859
    %v900 = vunpack.c.l.b16 %v860
    %v901 = vunpack.c.l.b16 %v861
    %v902 = vunpack.c.l.b16 %v862
    %v903 = vunpack.c.l.b16 %v863
    %v904 = vunpack.c.l.b16 %v864
    %v905 = vpack.c.b16 %v890, %v889
    %v906 = vpack.c.b16 %v892, %v891
    %v907 = vpack.c.b16 %v894, %v893
    %v908 = vpack.c.b16 %v896, %v895
    %v909 = vpack.c.b16 %v898, %v897
    %v910 = vpack.c.b16 %v900, %v899
    %v911 = vpack.c.b16 %v902, %v901
    %v912 = vpack.c.b16 %v904, %v903
    %921 = vmatprep.subr.bf16.mxu0 0
    %922 = vmatpush1.bf16.msra.mxu0 %v905
    %923 = vmatprep.subr.bf16.mxu0 0
    %924 = vmatpush1.bf16.msra.mxu0 %v906
    %925 = vmatprep.subr.bf16.mxu0 0
    %926 = vmatpush1.bf16.msra.mxu0 %v907
    %927 = vmatprep.subr.bf16.mxu0 0
    %928 = vmatpush1.bf16.msra.mxu0 %v908
    %929 = vmatprep.subr.bf16.mxu0 0
    %930 = vmatpush1.bf16.msra.mxu0 %v909
    %931 = vmatprep.subr.bf16.mxu0 0
    %932 = vmatpush1.bf16.msra.mxu0 %v910
    %933 = vmatprep.subr.bf16.mxu0 0
    %934 = vmatpush1.bf16.msra.mxu0 %v911
    %935 = vmatprep.subr.bf16.mxu0 0
    %936 = vmatpush1.bf16.msra.mxu0 %v912
    %937 = vmatprep.subr.bf16.mxu0 0
    %938 = vmatpush1.bf16.msra.mxu0 0
    %939 = vmatprep.subr.bf16.mxu0 0
    %940 = vmatpush1.bf16.msra.mxu0 0
    %941 = vmatprep.subr.bf16.mxu0 0
    %942 = vmatpush1.bf16.msra.mxu0 0
    %943 = vmatprep.subr.bf16.mxu0 0
    %944 = vmatpush1.bf16.msra.mxu0 0
    %945 = vmatprep.subr.bf16.mxu0 0
    %946 = vmatpush1.bf16.msra.mxu0 0
    %947 = vmatprep.subr.bf16.mxu0 0
    %948 = vmatpush1.bf16.msra.mxu0 0
    %949 = vmatprep.subr.bf16.mxu0 0
    %950 = vmatpush1.bf16.msra.mxu0 0
    %951 = vmatprep.subr.bf16.mxu0 0
    %952 = vmatpush1.bf16.msra.mxu0 0
    %953 = vmatprep.mubr.bf16.mxu0 0
    %954 = vmatmul.mubr.bf16.gmra.mrb[0].mxu0 %v840
    %v955 = vpop.f32.mrb[0].mxu0
    %v956 = vadd.f32 %v871, %v955
    %v957 = vpop.f32.mrb[0].mxu0
    %v958 = vpop.f32.mrb[0].mxu0
    %v959 = vadd.f32 %v871, %v958
    %v960 = vpop.f32.mrb[0].mxu0
    %961 = vmatprep.mubr.bf16.mxu0 0
    %962 = vmatmul.mubr.bf16.gmra.mrb[0].mxu0 %v841
    %v963 = vpop.f32.mrb[0].mxu0
    %v964 = vadd.f32 %v871, %v963
    %v965 = vpop.f32.mrb[0].mxu0
    %v966 = vpop.f32.mrb[0].mxu0
    %v967 = vadd.f32 %v871, %v966
    %v968 = vpop.f32.mrb[0].mxu0
    %969 = vmatprep.mubr.bf16.mxu0 0
    %970 = vmatmul.mubr.bf16.gmra.mrb[0].mxu0 %v842
    %v971 = vpop.f32.mrb[0].mxu0
    %v972 = vadd.f32 %v871, %v971
    %v973 = vpop.f32.mrb[0].mxu0
    %v974 = vpop.f32.mrb[0].mxu0
    %v975 = vadd.f32 %v871, %v974
    %v976 = vpop.f32.mrb[0].mxu0
    %977 = vmatprep.mubr.bf16.mxu0 0
    %978 = vmatmul.mubr.bf16.gmra.mrb[0].mxu0 %v843
    %v979 = vpop.f32.mrb[0].mxu0
    %v980 = vadd.f32 %v871, %v979
    %v981 = vpop.f32.mrb[0].mxu0
    %v982 = vpop.f32.mrb[0].mxu0
    %v983 = vadd.f32 %v871, %v982
    %v984 = vpop.f32.mrb[0].mxu0
    %985 = vmatprep.mubr.bf16.mxu0 0
    %986 = vmatmul.mubr.bf16.gmra.mrb[0].mxu0 %v844
    %v987 = vpop.f32.mrb[0].mxu0
    %v988 = vadd.f32 %v871, %v987
    %v989 = vpop.f32.mrb[0].mxu0
    %v990 = vpop.f32.mrb[0].mxu0
    %v991 = vadd.f32 %v871, %v990
    %v992 = vpop.f32.mrb[0].mxu0
    %993 = vmatprep.mubr.bf16.mxu0 0
    %994 = vmatmul.mubr.bf16.gmra.mrb[0].mxu0 %v845
    %v995 = vpop.f32.mrb[0].mxu0
    %v996 = vadd.f32 %v871, %v995
    %v997 = vpop.f32.mrb[0].mxu0
    %v998 = vpop.f32.mrb[0].mxu0
    %v999 = vadd.f32 %v871, %v998
    %v1000 = vpop.f32.mrb[0].mxu0
    %1001 = vmatprep.mubr.bf16.mxu0 0
    %1002 = vmatmul.mubr.bf16.gmra.mrb[0].mxu0 %v846
    %v1003 = vpop.f32.mrb[0].mxu0
    %v1004 = vadd.f32 %v871, %v1003
    %v1005 = vpop.f32.mrb[0].mxu0
    %v1006 = vpop.f32.mrb[0].mxu0
    %v1007 = vadd.f32 %v871, %v1006
    %v1008 = vpop.f32.mrb[0].mxu0
    %1009 = vmatprep.mubr.bf16.mxu0 0
    %1010 = vmatmul.mubr.bf16.gmra.mrb[0].mxu0 %v847
    %v1011 = vpop.f32.mrb[0].mxu0
    %v1012 = vadd.f32 %v871, %v1011
    %v1013 = vpop.f32.mrb[0].mxu0
    %v1014 = vpop.f32.mrb[0].mxu0
    %v1015 = vadd.f32 %v871, %v1014
    %v1016 = vpop.f32.mrb[0].mxu0
    %1017 = vdwg.mxu0
    %v1018 = vmax.f32 %v956, 0.0
    %v1019 = vmax.f32 %v959, 0.0
    %v1020 = vmax.f32 %v964, 0.0
    %v1021 = vmax.f32 %v967, 0.0
    %v1022 = vmax.f32 %v972, 0.0
    %v1023 = vmax.f32 %v975, 0.0
    %v1024 = vmax.f32 %v980, 0.0
    %v1025 = vmax.f32 %v983, 0.0
    %v1026 = vmax.f32 %v988, 0.0
    %v1027 = vmax.f32 %v991, 0.0
    %v1028 = vmax.f32 %v996, 0.0
    %v1029 = vmax.f32 %v999, 0.0
    %v1030 = vmax.f32 %v1004, 0.0
    %v1031 = vmax.f32 %v1007, 0.0
    %v1032 = vmax.f32 %v1012, 0.0
    %v1033 = vmax.f32 %v1015, 0.0
    %v1034 = vpack.c.bf16 %v1019, %v1018
    %v1035 = vpack.c.bf16 %v1021, %v1020
    %v1036 = vpack.c.bf16 %v1023, %v1022
    %v1037 = vpack.c.bf16 %v1025, %v1024
    %v1038 = vpack.c.bf16 %v1027, %v1026
    %v1039 = vpack.c.bf16 %v1029, %v1028
    %v1040 = vpack.c.bf16 %v1031, %v1030
    %v1041 = vpack.c.bf16 %v1033, %v1032
    %s1042 = scalar_lea.vmem [#allocation2], 256
    %v1043 = vld [vmem:[%s1042] sm:$0xf]
    %v1044 = vld [vmem:[%s1042 + $0x4] sm:$0xf]
    %v1045 = vld [vmem:[%s1042 + $0x8] sm:$0xf]
    %v1046 = vld [vmem:[%s1042 + $0xc] sm:$0xf]
    %v1047 = vld [vmem:[%s1042 + $0x10] sm:$0xf]
    %v1048 = vld [vmem:[%s1042 + $0x14] sm:$0xf]
    %v1049 = vld [vmem:[%s1042 + $0x18] sm:$0xf]
    %v1050 = vld [vmem:[%s1042 + $0x1c] sm:$0xf]
    %v1051 = vld [vmem:[%s1042 + $0x20] sm:$0xf]
    %v1052 = vld [vmem:[%s1042 + $0x24] sm:$0xf]
    %v1053 = vld [vmem:[%s1042 + $0x28] sm:$0xf]
    %v1054 = vld [vmem:[%s1042 + $0x2c] sm:$0xf]
    %v1055 = vld [vmem:[%s1042 + $0x30] sm:$0xf]
    %v1056 = vld [vmem:[%s1042 + $0x34] sm:$0xf]
    %v1057 = vld [vmem:[%s1042 + $0x38] sm:$0xf]
    %v1058 = vld [vmem:[%s1042 + $0x3c] sm:$0xf]
    %s1059 = scalar_lea.vmem %s4, 4
    %v1060 = vld [vmem:[%s1059] sm:$0x1]
    %v1062 = vlaneseq
    %v1063 = vshrl.u32 %v1062, 7
    %v1064 = vsub.s32 0, %v1063
    %v1065 = vrot.slane %v1060, %v1064
    %v1083 = vunpack.c.l.b16 %v1043
    %v1084 = vunpack.c.l.b16 %v1044
    %v1085 = vunpack.c.l.b16 %v1045
    %v1086 = vunpack.c.l.b16 %v1046
    %v1087 = vunpack.c.l.b16 %v1047
    %v1088 = vunpack.c.l.b16 %v1048
    %v1089 = vunpack.c.l.b16 %v1049
    %v1090 = vunpack.c.l.b16 %v1050
    %v1091 = vunpack.c.l.b16 %v1051
    %v1092 = vunpack.c.l.b16 %v1052
    %v1093 = vunpack.c.l.b16 %v1053
    %v1094 = vunpack.c.l.b16 %v1054
    %v1095 = vunpack.c.l.b16 %v1055
    %v1096 = vunpack.c.l.b16 %v1056
    %v1097 = vunpack.c.l.b16 %v1057
    %v1098 = vunpack.c.l.b16 %v1058
    %v1099 = vpack.c.b16 %v1084, %v1083
    %v1100 = vpack.c.b16 %v1086, %v1085
    %v1101 = vpack.c.b16 %v1088, %v1087
    %v1102 = vpack.c.b16 %v1090, %v1089
    %v1103 = vpack.c.b16 %v1092, %v1091
    %v1104 = vpack.c.b16 %v1094, %v1093
    %v1105 = vpack.c.b16 %v1096, %v1095
    %v1106 = vpack.c.b16 %v1098, %v1097
    %1115 = vmatprep.subr.bf16.mxu0 0
    %1116 = vmatpush1.bf16.msra.mxu0 %v1099
    %1117 = vmatprep.subr.bf16.mxu0 0
    %1118 = vmatpush1.bf16.msra.mxu0 %v1100
    %1119 = vmatprep.subr.bf16.mxu0 0
    %1120 = vmatpush1.bf16.msra.mxu0 %v1101
    %1121 = vmatprep.subr.bf16.mxu0 0
    %1122 = vmatpush1.bf16.msra.mxu0 %v1102
    %1123 = vmatprep.subr.bf16.mxu0 0
    %1124 = vmatpush1.bf16.msra.mxu0 %v1103
    %1125 = vmatprep.subr.bf16.mxu0 0
    %1126 = vmatpush1.bf16.msra.mxu0 %v1104
    %1127 = vmatprep.subr.bf16.mxu0 0
    %1128 = vmatpush1.bf16.msra.mxu0 %v1105
    %1129 = vmatprep.subr.bf16.mxu0 0
    %1130 = vmatpush1.bf16.msra.mxu0 %v1106
    %1131 = vmatprep.subr.bf16.mxu0 0
    %1132 = vmatpush1.bf16.msra.mxu0 0
    %1133 = vmatprep.subr.bf16.mxu0 0
    %1134 = vmatpush1.bf16.msra.mxu0 0
    %1135 = vmatprep.subr.bf16.mxu0 0
    %1136 = vmatpush1.bf16.msra.mxu0 0
    %1137 = vmatprep.subr.bf16.mxu0 0
    %1138 = vmatpush1.bf16.msra.mxu0 0
    %1139 = vmatprep.subr.bf16.mxu0 0
    %1140 = vmatpush1.bf16.msra.mxu0 0
    %1141 = vmatprep.subr.bf16.mxu0 0
    %1142 = vmatpush1.bf16.msra.mxu0 0
    %1143 = vmatprep.subr.bf16.mxu0 0
    %1144 = vmatpush1.bf16.msra.mxu0 0
    %1145 = vmatprep.subr.bf16.mxu0 0
    %1146 = vmatpush1.bf16.msra.mxu0 0
    %1147 = vmatprep.mubr.bf16.mxu0 0
    %1148 = vmatmul.mubr.bf16.gmra.mrb[0].mxu0 %v1034
    %v1149 = vpop.f32.mrb[0].mxu0
    %v1150 = vadd.f32 %v1065, %v1149
    %v1151 = vpop.f32.mrb[0].mxu0
    %v1152 = vpop.f32.mrb[0].mxu0
    %v1153 = vadd.f32 %v1065, %v1152
    %v1154 = vpop.f32.mrb[0].mxu0
    %1155 = vmatprep.mubr.bf16.mxu0 0
    %1156 = vmatmul.mubr.bf16.gmra.mrb[0].mxu0 %v1035
    %v1157 = vpop.f32.mrb[0].mxu0
    %v1158 = vadd.f32 %v1065, %v1157
    %v1159 = vpop.f32.mrb[0].mxu0
    %v1160 = vpop.f32.mrb[0].mxu0
    %v1161 = vadd.f32 %v1065, %v1160
    %v1162 = vpop.f32.mrb[0].mxu0
    %1163 = vmatprep.mubr.bf16.mxu0 0
    %1164 = vmatmul.mubr.bf16.gmra.mrb[0].mxu0 %v1036
    %v1165 = vpop.f32.mrb[0].mxu0
    %v1166 = vadd.f32 %v1065, %v1165
    %v1167 = vpop.f32.mrb[0].mxu0
    %v1168 = vpop.f32.mrb[0].mxu0
    %v1169 = vadd.f32 %v1065, %v1168
    %v1170 = vpop.f32.mrb[0].mxu0
    %1171 = vmatprep.mubr.bf16.mxu0 0
    %1172 = vmatmul.mubr.bf16.gmra.mrb[0].mxu0 %v1037
    %v1173 = vpop.f32.mrb[0].mxu0
    %v1174 = vadd.f32 %v1065, %v1173
    %v1175 = vpop.f32.mrb[0].mxu0
    %v1176 = vpop.f32.mrb[0].mxu0
    %v1177 = vadd.f32 %v1065, %v1176
    %v1178 = vpop.f32.mrb[0].mxu0
    %1179 = vmatprep.mubr.bf16.mxu0 0
    %1180 = vmatmul.mubr.bf16.gmra.mrb[0].mxu0 %v1038
    %v1181 = vpop.f32.mrb[0].mxu0
    %v1182 = vadd.f32 %v1065, %v1181
    %v1183 = vpop.f32.mrb[0].mxu0
    %v1184 = vpop.f32.mrb[0].mxu0
    %v1185 = vadd.f32 %v1065, %v1184
    %v1186 = vpop.f32.mrb[0].mxu0
    %1187 = vmatprep.mubr.bf16.mxu0 0
    %1188 = vmatmul.mubr.bf16.gmra.mrb[0].mxu0 %v1039
    %v1189 = vpop.f32.mrb[0].mxu0
    %v1190 = vadd.f32 %v1065, %v1189
    %v1191 = vpop.f32.mrb[0].mxu0
    %v1192 = vpop.f32.mrb[0].mxu0
    %v1193 = vadd.f32 %v1065, %v1192
    %v1194 = vpop.f32.mrb[0].mxu0
    %1195 = vmatprep.mubr.bf16.mxu0 0
    %1196 = vmatmul.mubr.bf16.gmra.mrb[0].mxu0 %v1040
    %v1197 = vpop.f32.mrb[0].mxu0
    %v1198 = vadd.f32 %v1065, %v1197
    %v1199 = vpop.f32.mrb[0].mxu0
    %v1200 = vpop.f32.mrb[0].mxu0
    %v1201 = vadd.f32 %v1065, %v1200
    %v1202 = vpop.f32.mrb[0].mxu0
    %1203 = vmatprep.mubr.bf16.mxu0 0
    %1204 = vmatmul.mubr.bf16.gmra.mrb[0].mxu0 %v1041
    %v1205 = vpop.f32.mrb[0].mxu0
    %v1206 = vadd.f32 %v1065, %v1205
    %v1207 = vpop.f32.mrb[0].mxu0
    %v1208 = vpop.f32.mrb[0].mxu0
    %v1209 = vadd.f32 %v1065, %v1208
    %v1210 = vpop.f32.mrb[0].mxu0
    %1211 = vdwg.mxu0
    %v1212 = vmax.f32 %v1150, 0.0
    %v1213 = vmax.f32 %v1153, 0.0
    %v1214 = vmax.f32 %v1158, 0.0
    %v1215 = vmax.f32 %v1161, 0.0
    %v1216 = vmax.f32 %v1166, 0.0
    %v1217 = vmax.f32 %v1169, 0.0
    %v1218 = vmax.f32 %v1174, 0.0
    %v1219 = vmax.f32 %v1177, 0.0
    %v1220 = vmax.f32 %v1182, 0.0
    %v1221 = vmax.f32 %v1185, 0.0
    %v1222 = vmax.f32 %v1190, 0.0
    %v1223 = vmax.f32 %v1193, 0.0
    %v1224 = vmax.f32 %v1198, 0.0
    %v1225 = vmax.f32 %v1201, 0.0
    %v1226 = vmax.f32 %v1206, 0.0
    %v1227 = vmax.f32 %v1209, 0.0
    %v1228 = vpack.c.bf16 %v1213, %v1212
    %v1229 = vpack.c.bf16 %v1215, %v1214
    %v1230 = vpack.c.bf16 %v1217, %v1216
    %v1231 = vpack.c.bf16 %v1219, %v1218
    %v1232 = vpack.c.bf16 %v1221, %v1220
    %v1233 = vpack.c.bf16 %v1223, %v1222
    %v1234 = vpack.c.bf16 %v1225, %v1224
    %v1235 = vpack.c.bf16 %v1227, %v1226
    %s1236 = scalar_lea.vmem [#allocation2], 320
    %v1237 = vld [vmem:[%s1236] sm:$0xf]
    %v1238 = vld [vmem:[%s1236 + $0x4] sm:$0xf]
    %v1239 = vld [vmem:[%s1236 + $0x8] sm:$0xf]
    %v1240 = vld [vmem:[%s1236 + $0xc] sm:$0xf]
    %v1241 = vld [vmem:[%s1236 + $0x10] sm:$0xf]
    %v1242 = vld [vmem:[%s1236 + $0x14] sm:$0xf]
    %v1243 = vld [vmem:[%s1236 + $0x18] sm:$0xf]
    %v1244 = vld [vmem:[%s1236 + $0x1c] sm:$0xf]
    %v1245 = vld [vmem:[%s1236 + $0x20] sm:$0xf]
    %v1246 = vld [vmem:[%s1236 + $0x24] sm:$0xf]
    %v1247 = vld [vmem:[%s1236 + $0x28] sm:$0xf]
    %v1248 = vld [vmem:[%s1236 + $0x2c] sm:$0xf]
    %v1249 = vld [vmem:[%s1236 + $0x30] sm:$0xf]
    %v1250 = vld [vmem:[%s1236 + $0x34] sm:$0xf]
    %v1251 = vld [vmem:[%s1236 + $0x38] sm:$0xf]
    %v1252 = vld [vmem:[%s1236 + $0x3c] sm:$0xf]
    %s1253 = scalar_lea.vmem %s4, 5
    %v1254 = vld [vmem:[%s1253] sm:$0x1]
    %v1256 = vlaneseq
    %v1257 = vshrl.u32 %v1256, 7
    %v1258 = vsub.s32 0, %v1257
    %v1259 = vrot.slane %v1254, %v1258
    %v1277 = vunpack.c.l.b16 %v1237
    %v1278 = vunpack.c.l.b16 %v1238
    %v1279 = vunpack.c.l.b16 %v1239
    %v1280 = vunpack.c.l.b16 %v1240
    %v1281 = vunpack.c.l.b16 %v1241
    %v1282 = vunpack.c.l.b16 %v1242
    %v1283 = vunpack.c.l.b16 %v1243
    %v1284 = vunpack.c.l.b16 %v1244
    %v1285 = vunpack.c.l.b16 %v1245
    %v1286 = vunpack.c.l.b16 %v1246
    %v1287 = vunpack.c.l.b16 %v1247
    %v1288 = vunpack.c.l.b16 %v1248
    %v1289 = vunpack.c.l.b16 %v1249
    %v1290 = vunpack.c.l.b16 %v1250
    %v1291 = vunpack.c.l.b16 %v1251
    %v1292 = vunpack.c.l.b16 %v1252
    %v1293 = vpack.c.b16 %v1278, %v1277
    %v1294 = vpack.c.b16 %v1280, %v1279
    %v1295 = vpack.c.b16 %v1282, %v1281
    %v1296 = vpack.c.b16 %v1284, %v1283
    %v1297 = vpack.c.b16 %v1286, %v1285
    %v1298 = vpack.c.b16 %v1288, %v1287
    %v1299 = vpack.c.b16 %v1290, %v1289
    %v1300 = vpack.c.b16 %v1292, %v1291
    %1309 = vmatprep.subr.bf16.mxu0 0
    %1310 = vmatpush1.bf16.msra.mxu0 %v1293
    %1311 = vmatprep.subr.bf16.mxu0 0
    %1312 = vmatpush1.bf16.msra.mxu0 %v1294
    %1313 = vmatprep.subr.bf16.mxu0 0
    %1314 = vmatpush1.bf16.msra.mxu0 %v1295
    %1315 = vmatprep.subr.bf16.mxu0 0
    %1316 = vmatpush1.bf16.msra.mxu0 %v1296
    %1317 = vmatprep.subr.bf16.mxu0 0
    %1318 = vmatpush1.bf16.msra.mxu0 %v1297
    %1319 = vmatprep.subr.bf16.mxu0 0
    %1320 = vmatpush1.bf16.msra.mxu0 %v1298
    %1321 = vmatprep.subr.bf16.mxu0 0
    %1322 = vmatpush1.bf16.msra.mxu0 %v1299
    %1323 = vmatprep.subr.bf16.mxu0 0
    %1324 = vmatpush1.bf16.msra.mxu0 %v1300
    %1325 = vmatprep.subr.bf16.mxu0 0
    %1326 = vmatpush1.bf16.msra.mxu0 0
    %1327 = vmatprep.subr.bf16.mxu0 0
    %1328 = vmatpush1.bf16.msra.mxu0 0
    %1329 = vmatprep.subr.bf16.mxu0 0
    %1330 = vmatpush1.bf16.msra.mxu0 0
    %1331 = vmatprep.subr.bf16.mxu0 0
    %1332 = vmatpush1.bf16.msra.mxu0 0
    %1333 = vmatprep.subr.bf16.mxu0 0
    %1334 = vmatpush1.bf16.msra.mxu0 0
    %1335 = vmatprep.subr.bf16.mxu0 0
    %1336 = vmatpush1.bf16.msra.mxu0 0
    %1337 = vmatprep.subr.bf16.mxu0 0
    %1338 = vmatpush1.bf16.msra.mxu0 0
    %1339 = vmatprep.subr.bf16.mxu0 0
    %1340 = vmatpush1.bf16.msra.mxu0 0
    %1341 = vmatprep.mubr.bf16.mxu0 0
    %1342 = vmatmul.mubr.bf16.gmra.mrb[0].mxu0 %v1228
    %v1343 = vpop.f32.mrb[0].mxu0
    %v1344 = vadd.f32 %v1259, %v1343
    %v1345 = vpop.f32.mrb[0].mxu0
    %v1346 = vpop.f32.mrb[0].mxu0
    %v1347 = vadd.f32 %v1259, %v1346
    %v1348 = vpop.f32.mrb[0].mxu0
    %1349 = vmatprep.mubr.bf16.mxu0 0
    %1350 = vmatmul.mubr.bf16.gmra.mrb[0].mxu0 %v1229
    %v1351 = vpop.f32.mrb[0].mxu0
    %v1352 = vadd.f32 %v1259, %v1351
    %v1353 = vpop.f32.mrb[0].mxu0
    %v1354 = vpop.f32.mrb[0].mxu0
    %v1355 = vadd.f32 %v1259, %v1354
    %v1356 = vpop.f32.mrb[0].mxu0
    %1357 = vmatprep.mubr.bf16.mxu0 0
    %1358 = vmatmul.mubr.bf16.gmra.mrb[0].mxu0 %v1230
    %v1359 = vpop.f32.mrb[0].mxu0
    %v1360 = vadd.f32 %v1259, %v1359
    %v1361 = vpop.f32.mrb[0].mxu0
    %v1362 = vpop.f32.mrb[0].mxu0
    %v1363 = vadd.f32 %v1259, %v1362
    %v1364 = vpop.f32.mrb[0].mxu0
    %1365 = vmatprep.mubr.bf16.mxu0 0
    %1366 = vmatmul.mubr.bf16.gmra.mrb[0].mxu0 %v1231
    %v1367 = vpop.f32.mrb[0].mxu0
    %v1368 = vadd.f32 %v1259, %v1367
    %v1369 = vpop.f32.mrb[0].mxu0
    %v1370 = vpop.f32.mrb[0].mxu0
    %v1371 = vadd.f32 %v1259, %v1370
    %v1372 = vpop.f32.mrb[0].mxu0
    %1373 = vmatprep.mubr.bf16.mxu0 0
    %1374 = vmatmul.mubr.bf16.gmra.mrb[0].mxu0 %v1232
    %v1375 = vpop.f32.mrb[0].mxu0
    %v1376 = vadd.f32 %v1259, %v1375
    %v1377 = vpop.f32.mrb[0].mxu0
    %v1378 = vpop.f32.mrb[0].mxu0
    %v1379 = vadd.f32 %v1259, %v1378
    %v1380 = vpop.f32.mrb[0].mxu0
    %1381 = vmatprep.mubr.bf16.mxu0 0
    %1382 = vmatmul.mubr.bf16.gmra.mrb[0].mxu0 %v1233
    %v1383 = vpop.f32.mrb[0].mxu0
    %v1384 = vadd.f32 %v1259, %v1383
    %v1385 = vpop.f32.mrb[0].mxu0
    %v1386 = vpop.f32.mrb[0].mxu0
    %v1387 = vadd.f32 %v1259, %v1386
    %v1388 = vpop.f32.mrb[0].mxu0
    %1389 = vmatprep.mubr.bf16.mxu0 0
    %1390 = vmatmul.mubr.bf16.gmra.mrb[0].mxu0 %v1234
    %v1391 = vpop.f32.mrb[0].mxu0
    %v1392 = vadd.f32 %v1259, %v1391
    %v1393 = vpop.f32.mrb[0].mxu0
    %v1394 = vpop.f32.mrb[0].mxu0
    %v1395 = vadd.f32 %v1259, %v1394
    %v1396 = vpop.f32.mrb[0].mxu0
    %1397 = vmatprep.mubr.bf16.mxu0 0
    %1398 = vmatmul.mubr.bf16.gmra.mrb[0].mxu0 %v1235
    %v1399 = vpop.f32.mrb[0].mxu0
    %v1400 = vadd.f32 %v1259, %v1399
    %v1401 = vpop.f32.mrb[0].mxu0
    %v1402 = vpop.f32.mrb[0].mxu0
    %v1403 = vadd.f32 %v1259, %v1402
    %v1404 = vpop.f32.mrb[0].mxu0
    %1405 = vdwg.mxu0
    %v1406 = vmax.f32 %v1344, 0.0
    %v1407 = vmax.f32 %v1347, 0.0
    %v1408 = vmax.f32 %v1352, 0.0
    %v1409 = vmax.f32 %v1355, 0.0
    %v1410 = vmax.f32 %v1360, 0.0
    %v1411 = vmax.f32 %v1363, 0.0
    %v1412 = vmax.f32 %v1368, 0.0
    %v1413 = vmax.f32 %v1371, 0.0
    %v1414 = vmax.f32 %v1376, 0.0
    %v1415 = vmax.f32 %v1379, 0.0
    %v1416 = vmax.f32 %v1384, 0.0
    %v1417 = vmax.f32 %v1387, 0.0
    %v1418 = vmax.f32 %v1392, 0.0
    %v1419 = vmax.f32 %v1395, 0.0
    %v1420 = vmax.f32 %v1400, 0.0
    %v1421 = vmax.f32 %v1403, 0.0
    %v1422 = vpack.c.bf16 %v1407, %v1406
    %v1423 = vpack.c.bf16 %v1409, %v1408
    %v1424 = vpack.c.bf16 %v1411, %v1410
    %v1425 = vpack.c.bf16 %v1413, %v1412
    %v1426 = vpack.c.bf16 %v1415, %v1414
    %v1427 = vpack.c.bf16 %v1417, %v1416
    %v1428 = vpack.c.bf16 %v1419, %v1418
    %v1429 = vpack.c.bf16 %v1421, %v1420
    %v1430 = vld [vmem:[%s2] sm:$0xf]
    %1431 = vmatprep.subr.bf16.mxu0 0
    %1432 = vmatpush1.bf16.msra.mxu0 %v1422
    %1433 = vmatprep.subr.bf16.mxu0 0
    %1434 = vmatpush1.bf16.msra.mxu0 %v1423
    %1435 = vmatprep.subr.bf16.mxu0 0
    %1436 = vmatpush1.bf16.msra.mxu0 %v1424
    %1437 = vmatprep.subr.bf16.mxu0 0
    %1438 = vmatpush1.bf16.msra.mxu0 %v1425
    %1439 = vmatprep.subr.bf16.mxu0 0
    %1440 = vmatpush1.bf16.msra.mxu0 %v1426
    %1441 = vmatprep.subr.bf16.mxu0 0
    %1442 = vmatpush1.bf16.msra.mxu0 %v1427
    %1443 = vmatprep.subr.bf16.mxu0 0
    %1444 = vmatpush1.bf16.msra.mxu0 %v1428
    %1445 = vmatprep.subr.bf16.mxu0 0
    %1446 = vmatpush1.bf16.msra.mxu0 %v1429
    %1447 = vmatprep.subr.bf16.mxu0 0
    %1448 = vmatpush1.bf16.msra.mxu0 0
    %1449 = vmatprep.subr.bf16.mxu0 0
    %1450 = vmatpush1.bf16.msra.mxu0 0
    %1451 = vmatprep.subr.bf16.mxu0 0
    %1452 = vmatpush1.bf16.msra.mxu0 0
    %1453 = vmatprep.subr.bf16.mxu0 0
    %1454 = vmatpush1.bf16.msra.mxu0 0
    %1455 = vmatprep.subr.bf16.mxu0 0
    %1456 = vmatpush1.bf16.msra.mxu0 0
    %1457 = vmatprep.subr.bf16.mxu0 0
    %1458 = vmatpush1.bf16.msra.mxu0 0
    %1459 = vmatprep.subr.bf16.mxu0 0
    %1460 = vmatpush1.bf16.msra.mxu0 0
    %1461 = vmatprep.subr.bf16.mxu0 0
    %1462 = vmatpush1.bf16.msra.mxu0 0
    %1463 = vmatprep.mubr.bf16.mxu0 0
    %1464 = vmatmul.mubr.bf16.gmra.mrb[0].mxu0 %v1430
    %v1465 = vpop.f32.mrb[0].mxu0
    %v1466 = vadd.f32 0.0, %v1465
    %v1467 = vpop.f32.mrb[0].mxu0
    %v1468 = vpop.f32.mrb[0].mxu0
    %v1469 = vpop.f32.mrb[0].mxu0
    %1470 = vdwg.mxu0
    %v1471 = vpack.c.bf16 %v1466, %v1466
    %s1472 = scalar_lea.vmem [#allocation2], 384
    %v1473 = vld [vmem:[%s1472] sm:$0xf]
    %v1474 = vld [vmem:[%s1472 + $0x4] sm:$0xf]
    %v1475 = vld [vmem:[%s1472 + $0x8] sm:$0xf]
    %v1476 = vld [vmem:[%s1472 + $0xc] sm:$0xf]
    %v1477 = vld [vmem:[%s1472 + $0x10] sm:$0xf]
    %v1478 = vld [vmem:[%s1472 + $0x14] sm:$0xf]
    %v1479 = vld [vmem:[%s1472 + $0x18] sm:$0xf]
    %v1480 = vld [vmem:[%s1472 + $0x1c] sm:$0xf]
    %v1481 = vld [vmem:[%s1472 + $0x20] sm:$0xf]
    %v1482 = vld [vmem:[%s1472 + $0x24] sm:$0xf]
    %v1483 = vld [vmem:[%s1472 + $0x28] sm:$0xf]
    %v1484 = vld [vmem:[%s1472 + $0x2c] sm:$0xf]
    %v1485 = vld [vmem:[%s1472 + $0x30] sm:$0xf]
    %v1486 = vld [vmem:[%s1472 + $0x34] sm:$0xf]
    %v1487 = vld [vmem:[%s1472 + $0x38] sm:$0xf]
    %v1488 = vld [vmem:[%s1472 + $0x3c] sm:$0xf]
    %s1489 = scalar_lea.vmem %s4, 6
    %v1490 = vld [vmem:[%s1489] sm:$0x1]
    %v1492 = vlaneseq
    %v1493 = vshrl.u32 %v1492, 7
    %v1494 = vsub.s32 0, %v1493
    %v1495 = vrot.slane %v1490, %v1494
    %v1513 = vunpack.c.l.b16 %v1473
    %v1514 = vunpack.c.l.b16 %v1474
    %v1515 = vunpack.c.l.b16 %v1475
    %v1516 = vunpack.c.l.b16 %v1476
    %v1517 = vunpack.c.l.b16 %v1477
    %v1518 = vunpack.c.l.b16 %v1478
    %v1519 = vunpack.c.l.b16 %v1479
    %v1520 = vunpack.c.l.b16 %v1480
    %v1521 = vunpack.c.l.b16 %v1481
    %v1522 = vunpack.c.l.b16 %v1482
    %v1523 = vunpack.c.l.b16 %v1483
    %v1524 = vunpack.c.l.b16 %v1484
    %v1525 = vunpack.c.l.b16 %v1485
    %v1526 = vunpack.c.l.b16 %v1486
    %v1527 = vunpack.c.l.b16 %v1487
    %v1528 = vunpack.c.l.b16 %v1488
    %v1529 = vpack.c.b16 %v1514, %v1513
    %v1530 = vpack.c.b16 %v1516, %v1515
    %v1531 = vpack.c.b16 %v1518, %v1517
    %v1532 = vpack.c.b16 %v1520, %v1519
    %v1533 = vpack.c.b16 %v1522, %v1521
    %v1534 = vpack.c.b16 %v1524, %v1523
    %v1535 = vpack.c.b16 %v1526, %v1525
    %v1536 = vpack.c.b16 %v1528, %v1527
    %1545 = vmatprep.subr.bf16.mxu0 0
    %1546 = vmatpush1.bf16.msra.mxu0 %v1529
    %1547 = vmatprep.subr.bf16.mxu0 0
    %1548 = vmatpush1.bf16.msra.mxu0 %v1530
    %1549 = vmatprep.subr.bf16.mxu0 0
    %1550 = vmatpush1.bf16.msra.mxu0 %v1531
    %1551 = vmatprep.subr.bf16.mxu0 0
    %1552 = vmatpush1.bf16.msra.mxu0 %v1532
    %1553 = vmatprep.subr.bf16.mxu0 0
    %1554 = vmatpush1.bf16.msra.mxu0 %v1533
    %1555 = vmatprep.subr.bf16.mxu0 0
    %1556 = vmatpush1.bf16.msra.mxu0 %v1534
    %1557 = vmatprep.subr.bf16.mxu0 0
    %1558 = vmatpush1.bf16.msra.mxu0 %v1535
    %1559 = vmatprep.subr.bf16.mxu0 0
    %1560 = vmatpush1.bf16.msra.mxu0 %v1536
    %1561 = vmatprep.subr.bf16.mxu0 0
    %1562 = vmatpush1.bf16.msra.mxu0 0
    %1563 = vmatprep.subr.bf16.mxu0 0
    %1564 = vmatpush1.bf16.msra.mxu0 0
    %1565 = vmatprep.subr.bf16.mxu0 0
    %1566 = vmatpush1.bf16.msra.mxu0 0
    %1567 = vmatprep.subr.bf16.mxu0 0
    %1568 = vmatpush1.bf16.msra.mxu0 0
    %1569 = vmatprep.subr.bf16.mxu0 0
    %1570 = vmatpush1.bf16.msra.mxu0 0
    %1571 = vmatprep.subr.bf16.mxu0 0
    %1572 = vmatpush1.bf16.msra.mxu0 0
    %1573 = vmatprep.subr.bf16.mxu0 0
    %1574 = vmatpush1.bf16.msra.mxu0 0
    %1575 = vmatprep.subr.bf16.mxu0 0
    %1576 = vmatpush1.bf16.msra.mxu0 0
    %1577 = vmatprep.mubr.bf16.mxu0 0
    %1578 = vmatmul.mubr.bf16.gmra.mrb[0].mxu0 %v1471
    %v1579 = vpop.f32.mrb[0].mxu0
    %v1580 = vadd.f32 %v1495, %v1579
    %v1581 = vpop.f32.mrb[0].mxu0
    %v1582 = vpop.f32.mrb[0].mxu0
    %v1583 = vpop.f32.mrb[0].mxu0
    %1584 = vdwg.mxu0
    %v1585 = vmax.f32 %v1580, 0.0
    %v1586 = vpack.c.bf16 %v1585, %v1585
    %s1587 = scalar_lea.vmem [#allocation2], 448
    %v1588 = vld [vmem:[%s1587] sm:$0xf]
    %v1589 = vld [vmem:[%s1587 + $0x4] sm:$0xf]
    %v1590 = vld [vmem:[%s1587 + $0x8] sm:$0xf]
    %v1591 = vld [vmem:[%s1587 + $0xc] sm:$0xf]
    %v1592 = vld [vmem:[%s1587 + $0x10] sm:$0xf]
    %v1593 = vld [vmem:[%s1587 + $0x14] sm:$0xf]
    %v1594 = vld [vmem:[%s1587 + $0x18] sm:$0xf]
    %v1595 = vld [vmem:[%s1587 + $0x1c] sm:$0xf]
    %v1596 = vld [vmem:[%s1587 + $0x20] sm:$0xf]
    %v1597 = vld [vmem:[%s1587 + $0x24] sm:$0xf]
    %v1598 = vld [vmem:[%s1587 + $0x28] sm:$0xf]
    %v1599 = vld [vmem:[%s1587 + $0x2c] sm:$0xf]
    %v1600 = vld [vmem:[%s1587 + $0x30] sm:$0xf]
    %v1601 = vld [vmem:[%s1587 + $0x34] sm:$0xf]
    %v1602 = vld [vmem:[%s1587 + $0x38] sm:$0xf]
    %v1603 = vld [vmem:[%s1587 + $0x3c] sm:$0xf]
    %s1604 = scalar_lea.vmem %s4, 7
    %v1605 = vld [vmem:[%s1604] sm:$0x1]
    %v1607 = vlaneseq
    %v1608 = vshrl.u32 %v1607, 7
    %v1609 = vsub.s32 0, %v1608
    %v1610 = vrot.slane %v1605, %v1609
    %v1628 = vunpack.c.l.b16 %v1588
    %v1629 = vunpack.c.l.b16 %v1589
    %v1630 = vunpack.c.l.b16 %v1590
    %v1631 = vunpack.c.l.b16 %v1591
    %v1632 = vunpack.c.l.b16 %v1592
    %v1633 = vunpack.c.l.b16 %v1593
    %v1634 = vunpack.c.l.b16 %v1594
    %v1635 = vunpack.c.l.b16 %v1595
    %v1636 = vunpack.c.l.b16 %v1596
    %v1637 = vunpack.c.l.b16 %v1597
    %v1638 = vunpack.c.l.b16 %v1598
    %v1639 = vunpack.c.l.b16 %v1599
    %v1640 = vunpack.c.l.b16 %v1600
    %v1641 = vunpack.c.l.b16 %v1601
    %v1642 = vunpack.c.l.b16 %v1602
    %v1643 = vunpack.c.l.b16 %v1603
    %v1644 = vpack.c.b16 %v1629, %v1628
    %v1645 = vpack.c.b16 %v1631, %v1630
    %v1646 = vpack.c.b16 %v1633, %v1632
    %v1647 = vpack.c.b16 %v1635, %v1634
    %v1648 = vpack.c.b16 %v1637, %v1636
    %v1649 = vpack.c.b16 %v1639, %v1638
    %v1650 = vpack.c.b16 %v1641, %v1640
    %v1651 = vpack.c.b16 %v1643, %v1642
    %1660 = vmatprep.subr.bf16.mxu0 0
    %1661 = vmatpush1.bf16.msra.mxu0 %v1644
    %1662 = vmatprep.subr.bf16.mxu0 0
    %1663 = vmatpush1.bf16.msra.mxu0 %v1645
    %1664 = vmatprep.subr.bf16.mxu0 0
    %1665 = vmatpush1.bf16.msra.mxu0 %v1646
    %1666 = vmatprep.subr.bf16.mxu0 0
    %1667 = vmatpush1.bf16.msra.mxu0 %v1647
    %1668 = vmatprep.subr.bf16.mxu0 0
    %1669 = vmatpush1.bf16.msra.mxu0 %v1648
    %1670 = vmatprep.subr.bf16.mxu0 0
    %1671 = vmatpush1.bf16.msra.mxu0 %v1649
    %1672 = vmatprep.subr.bf16.mxu0 0
    %1673 = vmatpush1.bf16.msra.mxu0 %v1650
    %1674 = vmatprep.subr.bf16.mxu0 0
    %1675 = vmatpush1.bf16.msra.mxu0 %v1651
    %1676 = vmatprep.subr.bf16.mxu0 0
    %1677 = vmatpush1.bf16.msra.mxu0 0
    %1678 = vmatprep.subr.bf16.mxu0 0
    %1679 = vmatpush1.bf16.msra.mxu0 0
    %1680 = vmatprep.subr.bf16.mxu0 0
    %1681 = vmatpush1.bf16.msra.mxu0 0
    %1682 = vmatprep.subr.bf16.mxu0 0
    %1683 = vmatpush1.bf16.msra.mxu0 0
    %1684 = vmatprep.subr.bf16.mxu0 0
    %1685 = vmatpush1.bf16.msra.mxu0 0
    %1686 = vmatprep.subr.bf16.mxu0 0
    %1687 = vmatpush1.bf16.msra.mxu0 0
    %1688 = vmatprep.subr.bf16.mxu0 0
    %1689 = vmatpush1.bf16.msra.mxu0 0
    %1690 = vmatprep.subr.bf16.mxu0 0
    %1691 = vmatpush1.bf16.msra.mxu0 0
    %1692 = vmatprep.mubr.bf16.mxu0 0
    %1693 = vmatmul.mubr.bf16.gmra.mrb[0].mxu0 %v1586
    %v1694 = vpop.f32.mrb[0].mxu0
    %v1695 = vadd.f32 %v1610, %v1694
    %v1696 = vpop.f32.mrb[0].mxu0
    %v1697 = vpop.f32.mrb[0].mxu0
    %v1698 = vpop.f32.mrb[0].mxu0
    %1699 = vdwg.mxu0
    %v1700 = vmax.f32 %v1695, 0.0
    %v1701 = vpack.c.bf16 %v1700, %v1700
    %s1702 = scalar_lea.vmem [#allocation2], 512
    %v1703 = vld [vmem:[%s1702] sm:$0xf]
    %v1704 = vld [vmem:[%s1702 + $0x4] sm:$0xf]
    %v1705 = vld [vmem:[%s1702 + $0x8] sm:$0xf]
    %v1706 = vld [vmem:[%s1702 + $0xc] sm:$0xf]
    %v1707 = vld [vmem:[%s1702 + $0x10] sm:$0xf]
    %v1708 = vld [vmem:[%s1702 + $0x14] sm:$0xf]
    %v1709 = vld [vmem:[%s1702 + $0x18] sm:$0xf]
    %v1710 = vld [vmem:[%s1702 + $0x1c] sm:$0xf]
    %v1711 = vld [vmem:[%s1702 + $0x20] sm:$0xf]
    %v1712 = vld [vmem:[%s1702 + $0x24] sm:$0xf]
    %v1713 = vld [vmem:[%s1702 + $0x28] sm:$0xf]
    %v1714 = vld [vmem:[%s1702 + $0x2c] sm:$0xf]
    %v1715 = vld [vmem:[%s1702 + $0x30] sm:$0xf]
    %v1716 = vld [vmem:[%s1702 + $0x34] sm:$0xf]
    %v1717 = vld [vmem:[%s1702 + $0x38] sm:$0xf]
    %v1718 = vld [vmem:[%s1702 + $0x3c] sm:$0xf]
    %s1719 = scalar_lea.vmem %s4, 8
    %v1720 = vld [vmem:[%s1719] sm:$0x1]
    %v1722 = vlaneseq
    %v1723 = vshrl.u32 %v1722, 7
    %v1724 = vsub.s32 0, %v1723
    %v1725 = vrot.slane %v1720, %v1724
    %v1743 = vunpack.c.l.b16 %v1703
    %v1744 = vunpack.c.l.b16 %v1704
    %v1745 = vunpack.c.l.b16 %v1705
    %v1746 = vunpack.c.l.b16 %v1706
    %v1747 = vunpack.c.l.b16 %v1707
    %v1748 = vunpack.c.l.b16 %v1708
    %v1749 = vunpack.c.l.b16 %v1709
    %v1750 = vunpack.c.l.b16 %v1710
    %v1751 = vunpack.c.l.b16 %v1711
    %v1752 = vunpack.c.l.b16 %v1712
    %v1753 = vunpack.c.l.b16 %v1713
    %v1754 = vunpack.c.l.b16 %v1714
    %v1755 = vunpack.c.l.b16 %v1715
    %v1756 = vunpack.c.l.b16 %v1716
    %v1757 = vunpack.c.l.b16 %v1717
    %v1758 = vunpack.c.l.b16 %v1718
    %v1759 = vpack.c.b16 %v1744, %v1743
    %v1760 = vpack.c.b16 %v1746, %v1745
    %v1761 = vpack.c.b16 %v1748, %v1747
    %v1762 = vpack.c.b16 %v1750, %v1749
    %v1763 = vpack.c.b16 %v1752, %v1751
    %v1764 = vpack.c.b16 %v1754, %v1753
    %v1765 = vpack.c.b16 %v1756, %v1755
    %v1766 = vpack.c.b16 %v1758, %v1757
    %1775 = vmatprep.subr.bf16.mxu0 0
    %1776 = vmatpush1.bf16.msra.mxu0 %v1759
    %1777 = vmatprep.subr.bf16.mxu0 0
    %1778 = vmatpush1.bf16.msra.mxu0 %v1760
    %1779 = vmatprep.subr.bf16.mxu0 0
    %1780 = vmatpush1.bf16.msra.mxu0 %v1761
    %1781 = vmatprep.subr.bf16.mxu0 0
    %1782 = vmatpush1.bf16.msra.mxu0 %v1762
    %1783 = vmatprep.subr.bf16.mxu0 0
    %1784 = vmatpush1.bf16.msra.mxu0 %v1763
    %1785 = vmatprep.subr.bf16.mxu0 0
    %1786 = vmatpush1.bf16.msra.mxu0 %v1764
    %1787 = vmatprep.subr.bf16.mxu0 0
    %1788 = vmatpush1.bf16.msra.mxu0 %v1765
    %1789 = vmatprep.subr.bf16.mxu0 0
    %1790 = vmatpush1.bf16.msra.mxu0 %v1766
    %1791 = vmatprep.subr.bf16.mxu0 0
    %1792 = vmatpush1.bf16.msra.mxu0 0
    %1793 = vmatprep.subr.bf16.mxu0 0
    %1794 = vmatpush1.bf16.msra.mxu0 0
    %1795 = vmatprep.subr.bf16.mxu0 0
    %1796 = vmatpush1.bf16.msra.mxu0 0
    %1797 = vmatprep.subr.bf16.mxu0 0
    %1798 = vmatpush1.bf16.msra.mxu0 0
    %1799 = vmatprep.subr.bf16.mxu0 0
    %1800 = vmatpush1.bf16.msra.mxu0 0
    %1801 = vmatprep.subr.bf16.mxu0 0
    %1802 = vmatpush1.bf16.msra.mxu0 0
    %1803 = vmatprep.subr.bf16.mxu0 0
    %1804 = vmatpush1.bf16.msra.mxu0 0
    %1805 = vmatprep.subr.bf16.mxu0 0
    %1806 = vmatpush1.bf16.msra.mxu0 0
    %1807 = vmatprep.mubr.bf16.mxu0 0
    %1808 = vmatmul.mubr.bf16.gmra.mrb[0].mxu0 %v1701
    %v1809 = vpop.f32.mrb[0].mxu0
    %v1810 = vadd.f32 %v1725, %v1809
    %v1811 = vpop.f32.mrb[0].mxu0
    %v1812 = vpop.f32.mrb[0].mxu0
    %v1813 = vpop.f32.mrb[0].mxu0
    %1814 = vdwg.mxu0
    %v1815 = vlaneseq
    %v1816 = vand.u32 %v1815, 127
    %vm1817 = vcmp.lt.s32.totalorder %v1816, 8
    %v1818 = vsel %vm1817, %v1810, -1e+30
    %1819 = vmax.xlane.f32.xlu0 %v1818
    %v1820 = vpop.xlane.xlu0 %1819
    %v1821 = vsub.f32 %v1818, %v1820
    %v1822 = vmul.f32 %v1821, 1.442695
    %v1823 = vpow.pop %v1822
    %v1824 = vsel %vm1817, %v1823, 0.0
    %1825 = vadd.xlane.f32.xlu0 %v1824
    %v1826 = vpop.xlane.xlu0 %1825
    %v1827 = vlog2.pop %v1826
    %v1828 = vmul.f32 %v1827, 0.6931472
    %v1829 = vsub.f32 %v1821, %v1828
    %1830 = vst [vmem:[%s5] sm:$0xff] %v1829
    // Predicated region
    $region26: #{forward.1} parent=1 // pred_check
      _
    $region27: #{forward.1} parent=1 // pred_check_branch
      %1832 = sbr.rel (0) target = $region29
    $region28: #{forward.1} parent=1 // pred_region
      _
    $region29: #{forward.1} parent=1 // pred_fallthru
      _
    // Predicated region
    $region30: #{forward.1} parent=1 // pred_check
      _
    $region31: #{forward.1} parent=1 // pred_check_branch
      %1834 = sbr.rel (0) target = $region33
    $region32: #{forward.1} parent=1 // pred_region
      _
    $region33: #{forward.1} parent=1 // pred_fallthru
      _
    %1835 = vsyncpa [#allocation3], 1

</llo_original>
